<compile_context>
chip_gen: v7x
topology: tpu7x:2x2x1
jax: 0.10.0
libtpu: 0.0.40
codegen_flags: <defaults>
</compile_context>

<pallas_src>
import functools

import jax
import jax.numpy as jnp
from jax.experimental import pallas as pl
from jax.experimental.pallas import tpu as pltpu

_LANE = 128
_SUBLANE = 8


def _round_up(n, m):
    return ((n + m - 1) // m) * m


def _fused_mlp_kernel(x_ref, *refs):
    """refs = (w0, b0, w1, b1, ..., out). One batch tile, all layers unrolled.

    Weights live in VMEM across all grid steps; intermediate activations never
    touch HBM.  Accumulation and the bias+ReLU epilogue are float32."""
    o_ref = refs[-1]
    wb_refs = refs[:-1]
    n_layers = len(wb_refs) // 2

    h = x_ref[...]  # [TM, Din]
    for l in range(n_layers):
        w_ref = wb_refs[2 * l]
        b_ref = wb_refs[2 * l + 1]
        acc = jnp.dot(h.astype(w_ref.dtype), w_ref[...],
                      preferred_element_type=jnp.float32)
        h = jnp.maximum(acc + b_ref[...], 0.0)  # f32 bias + ReLU epilogue
    o_ref[...] = h.astype(o_ref.dtype)


def init_dnn_params(key, inputs_dim, hidden_units):
    """Mirror the PyTorch init: kaiming_normal_(fan_in, relu) for weights,
    nn.Linear default uniform for bias.  Weights returned as [in, out]."""
    if len(hidden_units) == 0:
        raise ValueError('hidden_units is empty!!')
    dims = [inputs_dim] + list(hidden_units)
    params = []
    for i in range(len(dims) - 1):
        fan_in, fan_out = dims[i], dims[i + 1]
        key, kw, kb = jax.random.split(key, 3)
        std = (2.0 / fan_in) ** 0.5  # kaiming normal, fan_in, relu gain
        w = std * jax.random.normal(kw, (fan_in, fan_out), dtype=jnp.float32)
        bound = 1.0 / (fan_in ** 0.5)
        b = jax.random.uniform(kb, (fan_out,), dtype=jnp.float32,
                               minval=-bound, maxval=bound)
        params.append((w, b))
    return params


def prepare_dnn_params(params, compute_dtype=jnp.bfloat16):
    """One-time prepare: pad every layer's OUT dim to a multiple of 128 lanes
    (and its IN dim to the previous layer's padded width) and cast weights to
    `compute_dtype`.  Biases stay float32 (epilogue runs in f32).  Zero
    padding is numerically exact for Linear+ReLU.  Returns (prepared, out_dim).
    """
    prepared = []
    prev_pad = params[0][0].shape[0]  # first layer keeps its true in-dim (Din)
    for (w, b) in params:
        fi, fo = w.shape
        fo_pad = _round_up(fo, _LANE)
        w_p = jnp.zeros((prev_pad, fo_pad), compute_dtype)
        w_p = w_p.at[:fi, :fo].set(w.astype(compute_dtype))
        b_p = jnp.zeros((1, fo_pad), jnp.float32).at[0, :fo].set(
            b.astype(jnp.float32))
        prepared.append((w_p, b_p))
        prev_pad = fo_pad
    return prepared, params[-1][0].shape[1]


def dnn_forward(x, prepared, out_dim, dropout_rate=0.0, use_bn=False, *,
                block_m=512, out_dtype=jnp.float32, single_buffer_weights=True):
    """Forward pass of DNN: stacked Linear -> ReLU, fused into one Pallas call.

    `prepared` comes from prepare_dnn_params (padded + cast once, not per call).
    dropout_rate=0 -> identity, use_bn=False -> no BatchNorm (module defaults).
    """
    # TODO(synk): BatchNorm1d / dropout masking when use_bn=True or dropout_rate>0.
    assert dropout_rate == 0.0 and not use_bn, "only module defaults implemented"

    B, Din = x.shape
    assert prepared[0][0].shape[0] == Din
    dout_pad = prepared[-1][0].shape[1]

    # ---- batch tiling: ragged last block, >=2 tiles when B > 8 (v7x megacore) ----
    if B <= _SUBLANE:
        tm = B                                            # block == full dim
    else:
        tm = min(block_m, _round_up(pl.cdiv(B, 2), _SUBLANE))
    grid = (pl.cdiv(B, tm),)

    # Grid-invariant weights: single-buffered (halves resident VMEM footprint).
    wspec_kw = dict(pipeline_mode=pl.Buffered(1)) if single_buffer_weights else {}

    in_specs = [pl.BlockSpec((tm, Din), lambda i: (i, 0))]
    flat_args = []
    for (w_p, b_p) in prepared:
        flat_args.extend([w_p, b_p])
        in_specs.append(pl.BlockSpec(w_p.shape, lambda i: (0, 0), **wspec_kw))
        in_specs.append(pl.BlockSpec(b_p.shape, lambda i: (0, 0), **wspec_kw))

    # ---- VMEM budget: resident weights + pipelined x/out tiles + scratch ----
    wbuf = 1 if single_buffer_weights else 2
    weight_bytes = sum(w.size * w.dtype.itemsize + b.size * b.dtype.itemsize
                       for (w, b) in prepared)
    max_width = max([Din] + [w.shape[1] for (w, _) in prepared])
    vmem_need = (weight_bytes * wbuf
                 + 2 * tm * Din * x.dtype.itemsize
                 + 2 * tm * dout_pad * jnp.dtype(out_dtype).itemsize
                 + 3 * tm * max_width * 4)                # f32 activation scratch
    vmem_limit = int(min(128 * 1024 * 1024,
                         max(vmem_need + (8 << 20), 32 << 20)))

    flops = 2 * B * sum(w.shape[0] * w.shape[1] for (w, _) in prepared)
    bytes_accessed = (x.size * x.dtype.itemsize + weight_bytes
                      + B * dout_pad * jnp.dtype(out_dtype).itemsize)

    out = pl.pallas_call(
        _fused_mlp_kernel,
        out_shape=jax.ShapeDtypeStruct((B, dout_pad), out_dtype),
        grid=grid,
        in_specs=in_specs,
        out_specs=pl.BlockSpec((tm, dout_pad), lambda i: (i, 0)),
        compiler_params=pltpu.CompilerParams(
            dimension_semantics=("parallel",),
            vmem_limit_bytes=vmem_limit),
        cost_estimate=pl.CostEstimate(flops=flops, transcendentals=0,
                                      bytes_accessed=bytes_accessed),
    )(x, *flat_args)

    return out[:, :out_dim]


def _dnn_reference(x, params):
    h = x
    for (w, b) in params:
        h = jnp.maximum(h @ w + b, 0.0)
    return h


if __name__ == "__main__":
    key = jax.random.PRNGKey(0)
    k_in, k_params = jax.random.split(key)

    batch = 20                    # exercises 2 grid tiles + ragged last block
    inputs_dim = 32
    hidden_units = (64, 32, 16)

    x = jax.random.normal(k_in, (batch, inputs_dim), dtype=jnp.float32)
    params = init_dnn_params(k_params, inputs_dim, hidden_units)
    ref = _dnn_reference(x, params)

    def run(compute_dtype, single_buffer):
        prepared, out_dim = prepare_dnn_params(params, compute_dtype=compute_dtype)
        fwd = jax.jit(functools.partial(dnn_forward, out_dim=out_dim,
                                        single_buffer_weights=single_buffer))
        out = fwd(x, prepared)
        jax.block_until_ready(out)
        return out

    # bf16 operands (default fast path); fall back to double-buffered weight
    # specs if this JAX build rejects pipeline_mode=pl.Buffered(1).
    try:
        out_bf16 = run(jnp.bfloat16, True)
    except Exception:
        out_bf16 = run(jnp.bfloat16, False)

    # f32 operands: tighter numerical check against the pure-JAX reference.
    try:
        out_f32 = run(jnp.float32, True)
    except Exception:
        out_f32 = run(jnp.float32, False)

    assert out_bf16.shape == (batch, hidden_units[-1])
    assert out_f32.shape == (batch, hidden_units[-1])
    assert bool(jnp.all(out_bf16 >= 0.0)) and bool(jnp.all(out_f32 >= 0.0))
    assert bool(jnp.allclose(out_f32, ref, atol=2e-2, rtol=2e-2))
    assert bool(jnp.allclose(out_bf16, ref, atol=8e-2, rtol=8e-2))
    print("KERNEL_OK")
</pallas_src>

<mosaic_0001>
module attributes {stable_mosaic.version = 11 : i64} {
  func.func @_fused_mlp_kernel(%arg0: i32, %arg1: memref<16x32xf32, #tpu.memory_space<vmem>>, %arg2: memref<32x128xbf16, #tpu.memory_space<vmem>>, %arg3: memref<1x128xf32, #tpu.memory_space<vmem>>, %arg4: memref<128x128xbf16, #tpu.memory_space<vmem>>, %arg5: memref<1x128xf32, #tpu.memory_space<vmem>>, %arg6: memref<128x128xbf16, #tpu.memory_space<vmem>>, %arg7: memref<1x128xf32, #tpu.memory_space<vmem>>, %arg8: memref<16x128xf32, #tpu.memory_space<vmem>>) attributes {dimension_semantics = [#tpu.dimension_semantics<parallel>], iteration_bounds = array<i64: 2>, scalar_prefetch = 0 : i64, scratch_operands = 0 : i64, tpu.core_type = #tpu.core_type<tc>, window_params = [{transform_indices = @transform_0, window_bounds = array<i64: 16, 32>}, {pipeline_mode = #tpu.pipeline_mode<synchronous>, transform_indices = @transform_1, window_bounds = array<i64: 32, 128>}, {pipeline_mode = #tpu.pipeline_mode<synchronous>, transform_indices = @transform_2, window_bounds = array<i64: 1, 128>}, {pipeline_mode = #tpu.pipeline_mode<synchronous>, transform_indices = @transform_3, window_bounds = array<i64: 128, 128>}, {pipeline_mode = #tpu.pipeline_mode<synchronous>, transform_indices = @transform_4, window_bounds = array<i64: 1, 128>}, {pipeline_mode = #tpu.pipeline_mode<synchronous>, transform_indices = @transform_5, window_bounds = array<i64: 128, 128>}, {pipeline_mode = #tpu.pipeline_mode<synchronous>, transform_indices = @transform_6, window_bounds = array<i64: 1, 128>}, {transform_indices = @transform_7, window_bounds = array<i64: 16, 128>}]} {
    %c0 = arith.constant 0 : index
    %c0_0 = arith.constant 0 : index
    %0 = vector.load %arg1[%c0, %c0_0] : memref<16x32xf32, #tpu.memory_space<vmem>>, vector<16x32xf32>
    %1 = arith.truncf %0 : vector<16x32xf32> to vector<16x32xbf16>
    %c0_1 = arith.constant 0 : index
    %c0_2 = arith.constant 0 : index
    %2 = vector.load %arg2[%c0_1, %c0_2] : memref<32x128xbf16, #tpu.memory_space<vmem>>, vector<32x128xbf16>
    %cst = arith.constant dense<0.000000e+00> : vector<16x128xf32>
    %3 = tpu.matmul %1, %2, %cst {dimension_numbers = #tpu.dot_dimension_numbers<[1], [0], [0], [1], [0, 0, 1, 1], [], []>} : vector<16x32xbf16>, vector<32x128xbf16>, vector<16x128xf32> -> vector<16x128xf32>
    %c0_3 = arith.constant 0 : index
    %c0_4 = arith.constant 0 : index
    %4 = vector.load %arg3[%c0_3, %c0_4] : memref<1x128xf32, #tpu.memory_space<vmem>>, vector<1x128xf32>
    %5 = vector.broadcast %4 : vector<1x128xf32> to vector<16x128xf32>
    %6 = arith.addf %3, %5 : vector<16x128xf32>
    %cst_5 = arith.constant 0.000000e+00 : f32
    %7 = vector.broadcast %cst_5 : f32 to vector<16x128xf32>
    %8 = arith.maximumf %6, %7 : vector<16x128xf32>
    %9 = arith.truncf %8 : vector<16x128xf32> to vector<16x128xbf16>
    %c0_6 = arith.constant 0 : index
    %c0_7 = arith.constant 0 : index
    %10 = vector.load %arg4[%c0_6, %c0_7] : memref<128x128xbf16, #tpu.memory_space<vmem>>, vector<128x128xbf16>
    %cst_8 = arith.constant dense<0.000000e+00> : vector<16x128xf32>
    %11 = tpu.matmul %9, %10, %cst_8 {dimension_numbers = #tpu.dot_dimension_numbers<[1], [0], [0], [1], [0, 0, 1, 1], [], []>} : vector<16x128xbf16>, vector<128x128xbf16>, vector<16x128xf32> -> vector<16x128xf32>
    %c0_9 = arith.constant 0 : index
    %c0_10 = arith.constant 0 : index
    %12 = vector.load %arg5[%c0_9, %c0_10] : memref<1x128xf32, #tpu.memory_space<vmem>>, vector<1x128xf32>
    %13 = vector.broadcast %12 : vector<1x128xf32> to vector<16x128xf32>
    %14 = arith.addf %11, %13 : vector<16x128xf32>
    %cst_11 = arith.constant 0.000000e+00 : f32
    %15 = vector.broadcast %cst_11 : f32 to vector<16x128xf32>
    %16 = arith.maximumf %14, %15 : vector<16x128xf32>
    %17 = arith.truncf %16 : vector<16x128xf32> to vector<16x128xbf16>
    %c0_12 = arith.constant 0 : index
    %c0_13 = arith.constant 0 : index
    %18 = vector.load %arg6[%c0_12, %c0_13] : memref<128x128xbf16, #tpu.memory_space<vmem>>, vector<128x128xbf16>
    %cst_14 = arith.constant dense<0.000000e+00> : vector<16x128xf32>
    %19 = tpu.matmul %17, %18, %cst_14 {dimension_numbers = #tpu.dot_dimension_numbers<[1], [0], [0], [1], [0, 0, 1, 1], [], []>} : vector<16x128xbf16>, vector<128x128xbf16>, vector<16x128xf32> -> vector<16x128xf32>
    %c0_15 = arith.constant 0 : index
    %c0_16 = arith.constant 0 : index
    %20 = vector.load %arg7[%c0_15, %c0_16] : memref<1x128xf32, #tpu.memory_space<vmem>>, vector<1x128xf32>
    %21 = vector.broadcast %20 : vector<1x128xf32> to vector<16x128xf32>
    %22 = arith.addf %19, %21 : vector<16x128xf32>
    %cst_17 = arith.constant 0.000000e+00 : f32
    %23 = vector.broadcast %cst_17 : f32 to vector<16x128xf32>
    %24 = arith.maximumf %22, %23 : vector<16x128xf32>
    %c0_18 = arith.constant 0 : index
    %c0_19 = arith.constant 0 : index
    %25 = vector.load %arg8[%c0_18, %c0_19] : memref<16x128xf32, #tpu.memory_space<vmem>>, vector<16x128xf32>
    tpu.vector_store %arg8[%c0_18, %c0_19], %24 {strides = array<i32>} : memref<16x128xf32, #tpu.memory_space<vmem>>, vector<16x128xf32>,
    return
  }
  func.func @transform_0(%arg0: i32) -> (i32, i32) {
    %c0_i32 = arith.constant 0 : i32
    %c0_i32_0 = arith.constant 0 : i32
    return %arg0, %c0_i32 : i32, i32
  }
  func.func @transform_1(%arg0: i32) -> (i32, i32) {
    %c0_i32 = arith.constant 0 : i32
    %c0_i32_0 = arith.constant 0 : i32
    %c0_i32_1 = arith.constant 0 : i32
    return %c0_i32, %c0_i32_0 : i32, i32
  }
  func.func @transform_2(%arg0: i32) -> (i32, i32) {
    %c0_i32 = arith.constant 0 : i32
    %c0_i32_0 = arith.constant 0 : i32
    %c0_i32_1 = arith.constant 0 : i32
    return %c0_i32, %c0_i32_0 : i32, i32
  }
  func.func @transform_3(%arg0: i32) -> (i32, i32) {
    %c0_i32 = arith.constant 0 : i32
    %c0_i32_0 = arith.constant 0 : i32
    %c0_i32_1 = arith.constant 0 : i32
    return %c0_i32, %c0_i32_0 : i32, i32
  }
  func.func @transform_4(%arg0: i32) -> (i32, i32) {
    %c0_i32 = arith.constant 0 : i32
    %c0_i32_0 = arith.constant 0 : i32
    %c0_i32_1 = arith.constant 0 : i32
    return %c0_i32, %c0_i32_0 : i32, i32
  }
  func.func @transform_5(%arg0: i32) -> (i32, i32) {
    %c0_i32 = arith.constant 0 : i32
    %c0_i32_0 = arith.constant 0 : i32
    %c0_i32_1 = arith.constant 0 : i32
    return %c0_i32, %c0_i32_0 : i32, i32
  }
  func.func @transform_6(%arg0: i32) -> (i32, i32) {
    %c0_i32 = arith.constant 0 : i32
    %c0_i32_0 = arith.constant 0 : i32
    %c0_i32_1 = arith.constant 0 : i32
    return %c0_i32, %c0_i32_0 : i32, i32
  }
  func.func @transform_7(%arg0: i32) -> (i32, i32) {
    %c0_i32 = arith.constant 0 : i32
    %c0_i32_0 = arith.constant 0 : i32
    return %arg0, %c0_i32 : i32, i32
  }
}

module attributes {stable_mosaic.version = 11 : i64} {
  func.func @_fused_mlp_kernel(%arg0: i32, %arg1: memref<16x32xf32, #tpu.memory_space<vmem>>, %arg2: memref<32x128xbf16, #tpu.memory_space<vmem>>, %arg3: memref<1x128xf32, #tpu.memory_space<vmem>>, %arg4: memref<128x128xbf16, #tpu.memory_space<vmem>>, %arg5: memref<1x128xf32, #tpu.memory_space<vmem>>, %arg6: memref<128x128xbf16, #tpu.memory_space<vmem>>, %arg7: memref<1x128xf32, #tpu.memory_space<vmem>>, %arg8: memref<16x128xf32, #tpu.memory_space<vmem>>) attributes {dimension_semantics = [#tpu.dimension_semantics<parallel>], iteration_bounds = array<i64: 2>, scalar_prefetch = 0 : i64, scratch_operands = 0 : i64, tpu.core_type = #tpu.core_type<tc>, window_params = [{transform_indices = @transform_0, window_bounds = array<i64: 16, 32>}, {pipeline_mode = #tpu.pipeline_mode<synchronous>, transform_indices = @transform_1, window_bounds = array<i64: 32, 128>}, {pipeline_mode = #tpu.pipeline_mode<synchronous>, transform_indices = @transform_2, window_bounds = array<i64: 1, 128>}, {pipeline_mode = #tpu.pipeline_mode<synchronous>, transform_indices = @transform_3, window_bounds = array<i64: 128, 128>}, {pipeline_mode = #tpu.pipeline_mode<synchronous>, transform_indices = @transform_4, window_bounds = array<i64: 1, 128>}, {pipeline_mode = #tpu.pipeline_mode<synchronous>, transform_indices = @transform_5, window_bounds = array<i64: 128, 128>}, {pipeline_mode = #tpu.pipeline_mode<synchronous>, transform_indices = @transform_6, window_bounds = array<i64: 1, 128>}, {transform_indices = @transform_7, window_bounds = array<i64: 16, 128>}]} {
    %c0 = arith.constant 0 : index
    %c0_0 = arith.constant 0 : index
    %0 = vector.load %arg1[%c0, %c0_0] : memref<16x32xf32, #tpu.memory_space<vmem>>, vector<16x32xf32>
    %1 = arith.truncf %0 : vector<16x32xf32> to vector<16x32xbf16>
    %c0_1 = arith.constant 0 : index
    %c0_2 = arith.constant 0 : index
    %2 = vector.load %arg2[%c0_1, %c0_2] : memref<32x128xbf16, #tpu.memory_space<vmem>>, vector<32x128xbf16>
    %cst = arith.constant dense<0.000000e+00> : vector<16x128xf32>
    %3 = tpu.matmul %1, %2, %cst {dimension_numbers = #tpu.dot_dimension_numbers<[1], [0], [0], [1], [0, 0, 1, 1], [], []>} : vector<16x32xbf16>, vector<32x128xbf16>, vector<16x128xf32> -> vector<16x128xf32>
    %c0_3 = arith.constant 0 : index
    %c0_4 = arith.constant 0 : index
    %4 = vector.load %arg3[%c0_3, %c0_4] : memref<1x128xf32, #tpu.memory_space<vmem>>, vector<1x128xf32>
    %5 = vector.broadcast %4 : vector<1x128xf32> to vector<16x128xf32>
    %6 = arith.addf %3, %5 : vector<16x128xf32>
    %cst_5 = arith.constant 0.000000e+00 : f32
    %7 = vector.broadcast %cst_5 : f32 to vector<16x128xf32>
    %8 = arith.maximumf %6, %7 : vector<16x128xf32>
    %9 = arith.truncf %8 : vector<16x128xf32> to vector<16x128xbf16>
    %c0_6 = arith.constant 0 : index
    %c0_7 = arith.constant 0 : index
    %10 = vector.load %arg4[%c0_6, %c0_7] : memref<128x128xbf16, #tpu.memory_space<vmem>>, vector<128x128xbf16>
    %cst_8 = arith.constant dense<0.000000e+00> : vector<16x128xf32>
    %11 = tpu.matmul %9, %10, %cst_8 {dimension_numbers = #tpu.dot_dimension_numbers<[1], [0], [0], [1], [0, 0, 1, 1], [], []>} : vector<16x128xbf16>, vector<128x128xbf16>, vector<16x128xf32> -> vector<16x128xf32>
    %c0_9 = arith.constant 0 : index
    %c0_10 = arith.constant 0 : index
    %12 = vector.load %arg5[%c0_9, %c0_10] : memref<1x128xf32, #tpu.memory_space<vmem>>, vector<1x128xf32>
    %13 = vector.broadcast %12 : vector<1x128xf32> to vector<16x128xf32>
    %14 = arith.addf %11, %13 : vector<16x128xf32>
    %cst_11 = arith.constant 0.000000e+00 : f32
    %15 = vector.broadcast %cst_11 : f32 to vector<16x128xf32>
    %16 = arith.maximumf %14, %15 : vector<16x128xf32>
    %17 = arith.truncf %16 : vector<16x128xf32> to vector<16x128xbf16>
    %c0_12 = arith.constant 0 : index
    %c0_13 = arith.constant 0 : index
    %18 = vector.load %arg6[%c0_12, %c0_13] : memref<128x128xbf16, #tpu.memory_space<vmem>>, vector<128x128xbf16>
    %cst_14 = arith.constant dense<0.000000e+00> : vector<16x128xf32>
    %19 = tpu.matmul %17, %18, %cst_14 {dimension_numbers = #tpu.dot_dimension_numbers<[1], [0], [0], [1], [0, 0, 1, 1], [], []>} : vector<16x128xbf16>, vector<128x128xbf16>, vector<16x128xf32> -> vector<16x128xf32>
    %c0_15 = arith.constant 0 : index
    %c0_16 = arith.constant 0 : index
    %20 = vector.load %arg7[%c0_15, %c0_16] : memref<1x128xf32, #tpu.memory_space<vmem>>, vector<1x128xf32>
    %21 = vector.broadcast %20 : vector<1x128xf32> to vector<16x128xf32>
    %22 = arith.addf %19, %21 : vector<16x128xf32>
    %cst_17 = arith.constant 0.000000e+00 : f32
    %23 = vector.broadcast %cst_17 : f32 to vector<16x128xf32>
    %24 = arith.maximumf %22, %23 : vector<16x128xf32>
    %c0_18 = arith.constant 0 : index
    %c0_19 = arith.constant 0 : index
    %25 = vector.load %arg8[%c0_18, %c0_19] : memref<16x128xf32, #tpu.memory_space<vmem>>, vector<16x128xf32>
    tpu.vector_store %arg8[%c0_18, %c0_19], %24 {strides = array<i32>} : memref<16x128xf32, #tpu.memory_space<vmem>>, vector<16x128xf32>,
    return
  }
  func.func @transform_0(%arg0: i32) -> (i32, i32) {
    %c0_i32 = arith.constant 0 : i32
    %c0_i32_0 = arith.constant 0 : i32
    return %arg0, %c0_i32 : i32, i32
  }
  func.func @transform_1(%arg0: i32) -> (i32, i32) {
    %c0_i32 = arith.constant 0 : i32
    %c0_i32_0 = arith.constant 0 : i32
    %c0_i32_1 = arith.constant 0 : i32
    return %c0_i32, %c0_i32_0 : i32, i32
  }
  func.func @transform_2(%arg0: i32) -> (i32, i32) {
    %c0_i32 = arith.constant 0 : i32
    %c0_i32_0 = arith.constant 0 : i32
    %c0_i32_1 = arith.constant 0 : i32
    return %c0_i32, %c0_i32_0 : i32, i32
  }
  func.func @transform_3(%arg0: i32) -> (i32, i32) {
    %c0_i32 = arith.constant 0 : i32
    %c0_i32_0 = arith.constant 0 : i32
    %c0_i32_1 = arith.constant 0 : i32
    return %c0_i32, %c0_i32_0 : i32, i32
  }
  func.func @transform_4(%arg0: i32) -> (i32, i32) {
    %c0_i32 = arith.constant 0 : i32
    %c0_i32_0 = arith.constant 0 : i32
    %c0_i32_1 = arith.constant 0 : i32
    return %c0_i32, %c0_i32_0 : i32, i32
  }
  func.func @transform_5(%arg0: i32) -> (i32, i32) {
    %c0_i32 = arith.constant 0 : i32
    %c0_i32_0 = arith.constant 0 : i32
    %c0_i32_1 = arith.constant 0 : i32
    return %c0_i32, %c0_i32_0 : i32, i32
  }
  func.func @transform_6(%arg0: i32) -> (i32, i32) {
    %c0_i32 = arith.constant 0 : i32
    %c0_i32_0 = arith.constant 0 : i32
    %c0_i32_1 = arith.constant 0 : i32
    return %c0_i32, %c0_i32_0 : i32, i32
  }
  func.func @transform_7(%arg0: i32) -> (i32, i32) {
    %c0_i32 = arith.constant 0 : i32
    %c0_i32_0 = arith.constant 0 : i32
    return %arg0, %c0_i32 : i32, i32
  }
}

</mosaic_0001>

<llo_original>
// kernel: dnn_forward.1
$region0: #{dnn_forward.1}
  #allocation0 [shape = 'u32[]', space=smem, size = 0x4, offset = 0x4, fixed_abs, tag = 'smem constant byte address 0x4 - core index']
  #allocation1 [shape = 'u32[144,128]{1,0:T(1,128)}', space=vmem, size = 0x12000, scoped, tag = 'internal scratch']
  %s0 = inlined_call_operand.hbm [shape: f32[20,32], index: 0, kind: input, shape index: {}]
  %s1 = inlined_call_operand.hbm [shape: bf16[32,128], index: 1, kind: input, shape index: {}]
  %s2 = inlined_call_operand.vmem [shape: f32[1,128], index: 2, kind: input, shape index: {}]
  %s3 = inlined_call_operand.hbm [shape: bf16[128,128], index: 3, kind: input, shape index: {}]
  %s4 = inlined_call_operand.vmem [shape: f32[1,128], index: 4, kind: input, shape index: {}]
  %s5 = inlined_call_operand.hbm [shape: bf16[128,128], index: 5, kind: input, shape index: {}]
  %s6 = inlined_call_operand.vmem [shape: f32[1,128], index: 6, kind: input, shape index: {}]
  %s7 = inlined_call_operand.vmem [shape: f32[20,128], index: 7, kind: output, shape index: {}]
  %s8 = sld [smem:[#allocation0]]
  $region125: #{dnn_forward.1} parent=0
    _
  %s10 = ssub.s32 1, %s8
  %s11 = scalar_select 0, %s10, %s8
  $region1: #{dnn_forward.1} parent=0
    #allocation2 [shape = 'u8[16384]{0}', space=vmem, size = 0x4000, scoped, tag = 'input window, operand 0']
    #allocation3 [shape = 's32[2]{0}', space=sflag, size = 0x8, scoped, tag = 'scoped memory for dnn_forward.1']
    #allocation4 [shape = 'u8[8192]{0}', space=vmem, size = 0x2000, scoped, tag = 'input window, operand 1, single buffered']
    #allocation5 [shape = 's32[1]{0}', space=sflag, size = 0x4, scoped, tag = 'scoped memory for dnn_forward.1']
    #allocation6 [shape = 'u8[32768]{0}', space=vmem, size = 0x8000, scoped, tag = 'input window, operand 3, single buffered']
    #allocation7 [shape = 'u8[32768]{0}', space=vmem, size = 0x8000, scoped, tag = 'input window, operand 5, single buffered']
    #allocation8 [shape = 's32[1]{0}', space=sflag, size = 0x4, scoped, tag = 'scoped memory for dnn_forward.1']
    #allocation9 [shape = 'u8[16384]{0}', space=vmem, size = 0x4000, scoped, tag = 'output window, operand 0']
    %12 = vsyncpa [#allocation3], 0
    %s13 = scalar_lea.sflag [#allocation3], 1
    %14 = vsyncpa %s13, 0
    %15 = vsyncpa [#allocation5], 0
    %16 = vsyncpa [#allocation8], 0
    loop: start=0, step=1, limit=4
    $region2: #{dnn_forward.1} parent=1 // loop_pre_header
      _
    $region3: #{dnn_forward.1} parent=1 // loop_header
      %s18 = sphi 0, %s22
      %p19 = scmp.ge.s32.totalorder %s18, 4
      %s28 = sphi 0, %s30
      %s31 = sphi 0, %s28
      %s32 = sphi 0, %s31
      %s48 = sphi 0, %s32
      %s52 = sphi 0, %s52
      %s54 = sphi 0, %s52
      %s55 = sphi 0, %s54
      %s69 = sphi 0, %s55
      %s73 = sphi 0, %s73
      %s75 = sphi 0, %s73
      %s76 = sphi 0, %s75
      %s90 = sphi 0, %s76
      %s94 = sphi 0, %s94
      %s96 = sphi 0, %s94
      %s97 = sphi 0, %s96
      %s111 = sphi 0, %s97
      %s115 = sphi 0, %s115
      %s117 = sphi 0, %s115
      %s118 = sphi 0, %s117
      %s132 = sphi 0, %s118
      %s136 = sphi 0, %s136
      %s138 = sphi 0, %s136
      %s139 = sphi 0, %s138
      %s153 = sphi 0, %s139
      %s157 = sphi 0, %s157
      %s159 = sphi 0, %s157
      %s160 = sphi 0, %s159
      %s174 = sphi 0, %s160
      %s180 = sphi 0, %s182
      %s183 = sphi 0, %s180
      %s184 = sphi 0, %s183
      %s200 = sphi 0, %s184
    $region4: #{dnn_forward.1} parent=1 // loop_header_branch
      %21 = sbr.rel (%p19) target = $region8
    $region5: #{dnn_forward.1} parent=1 // loop_body
      %s23 = ssub.s32 %s18, 1
      %s24 = ssub.s32 %s18, 2
      %s25 = sadd.s32 %s18, 1
      %s26 = ssub.s32 %s18, %s25
      %p27 = scmp.eq.s32.totalorder %s26, 0
      %s29 = sadd.s32 %s28, 1
      %s30 = scalar_select %p27, %s28, %s29
      %p33 = pneg %p27
      %p34 = scmp.eq.s32.totalorder %s18, 1
      %p35 = por %p33, %p34
      %p36 = scmp.ne.s32.totalorder %s28, %s31
      %p37 = scmp.eq.s32.totalorder %s18, 0
      %p38 = por %p36, %p37
      %p39 = scmp.ne.s32.totalorder %s28, %s31
      %p40 = scmp.eq.s32.totalorder %s23, 1
      %p41 = por %p39, %p40
      %p42 = scmp.ne.s32.totalorder %s31, %s32
      %p43 = scmp.eq.s32.totalorder %s23, 0
      %p44 = por %p42, %p43
      %p45 = scmp.ne.s32.totalorder %s31, %s32
      %p46 = scmp.eq.s32.totalorder %s24, 1
      %p47 = por %p45, %p46
      %p49 = scmp.ne.s32.totalorder %s32, %s48
      %p50 = scmp.eq.s32.totalorder %s24, 0
      %p51 = por %p49, %p50
      %s53 = sadd.s32 %s52, 1
      %p56 = scmp.eq.s32.totalorder %s18, 1
      %p57 = scmp.ne.s32.totalorder %s52, %s54
      %p58 = scmp.eq.s32.totalorder %s18, 0
      %p59 = por %p57, %p58
      %p60 = scmp.ne.s32.totalorder %s52, %s54
      %p61 = scmp.eq.s32.totalorder %s23, 1
      %p62 = por %p60, %p61
      %p63 = scmp.ne.s32.totalorder %s54, %s55
      %p64 = scmp.eq.s32.totalorder %s23, 0
      %p65 = por %p63, %p64
      %p66 = scmp.ne.s32.totalorder %s54, %s55
      %p67 = scmp.eq.s32.totalorder %s24, 1
      %p68 = por %p66, %p67
      %p70 = scmp.ne.s32.totalorder %s55, %s69
      %p71 = scmp.eq.s32.totalorder %s24, 0
      %p72 = por %p70, %p71
      %s74 = sadd.s32 %s73, 1
      %p77 = scmp.eq.s32.totalorder %s18, 1
      %p78 = scmp.ne.s32.totalorder %s73, %s75
      %p79 = scmp.eq.s32.totalorder %s18, 0
      %p80 = por %p78, %p79
      %p81 = scmp.ne.s32.totalorder %s73, %s75
      %p82 = scmp.eq.s32.totalorder %s23, 1
      %p83 = por %p81, %p82
      %p84 = scmp.ne.s32.totalorder %s75, %s76
      %p85 = scmp.eq.s32.totalorder %s23, 0
      %p86 = por %p84, %p85
      %p87 = scmp.ne.s32.totalorder %s75, %s76
      %p88 = scmp.eq.s32.totalorder %s24, 1
      %p89 = por %p87, %p88
      %p91 = scmp.ne.s32.totalorder %s76, %s90
      %p92 = scmp.eq.s32.totalorder %s24, 0
      %p93 = por %p91, %p92
      %s95 = sadd.s32 %s94, 1
      %p98 = scmp.eq.s32.totalorder %s18, 1
      %p99 = scmp.ne.s32.totalorder %s94, %s96
      %p100 = scmp.eq.s32.totalorder %s18, 0
      %p101 = por %p99, %p100
      %p102 = scmp.ne.s32.totalorder %s94, %s96
      %p103 = scmp.eq.s32.totalorder %s23, 1
      %p104 = por %p102, %p103
      %p105 = scmp.ne.s32.totalorder %s96, %s97
      %p106 = scmp.eq.s32.totalorder %s23, 0
      %p107 = por %p105, %p106
      %p108 = scmp.ne.s32.totalorder %s96, %s97
      %p109 = scmp.eq.s32.totalorder %s24, 1
      %p110 = por %p108, %p109
      %p112 = scmp.ne.s32.totalorder %s97, %s111
      %p113 = scmp.eq.s32.totalorder %s24, 0
      %p114 = por %p112, %p113
      %s116 = sadd.s32 %s115, 1
      %p119 = scmp.eq.s32.totalorder %s18, 1
      %p120 = scmp.ne.s32.totalorder %s115, %s117
      %p121 = scmp.eq.s32.totalorder %s18, 0
      %p122 = por %p120, %p121
      %p123 = scmp.ne.s32.totalorder %s115, %s117
      %p124 = scmp.eq.s32.totalorder %s23, 1
      %p125 = por %p123, %p124
      %p126 = scmp.ne.s32.totalorder %s117, %s118
      %p127 = scmp.eq.s32.totalorder %s23, 0
      %p128 = por %p126, %p127
      %p129 = scmp.ne.s32.totalorder %s117, %s118
      %p130 = scmp.eq.s32.totalorder %s24, 1
      %p131 = por %p129, %p130
      %p133 = scmp.ne.s32.totalorder %s118, %s132
      %p134 = scmp.eq.s32.totalorder %s24, 0
      %p135 = por %p133, %p134
      %s137 = sadd.s32 %s136, 1
      %p140 = scmp.eq.s32.totalorder %s18, 1
      %p141 = scmp.ne.s32.totalorder %s136, %s138
      %p142 = scmp.eq.s32.totalorder %s18, 0
      %p143 = por %p141, %p142
      %p144 = scmp.ne.s32.totalorder %s136, %s138
      %p145 = scmp.eq.s32.totalorder %s23, 1
      %p146 = por %p144, %p145
      %p147 = scmp.ne.s32.totalorder %s138, %s139
      %p148 = scmp.eq.s32.totalorder %s23, 0
      %p149 = por %p147, %p148
      %p150 = scmp.ne.s32.totalorder %s138, %s139
      %p151 = scmp.eq.s32.totalorder %s24, 1
      %p152 = por %p150, %p151
      %p154 = scmp.ne.s32.totalorder %s139, %s153
      %p155 = scmp.eq.s32.totalorder %s24, 0
      %p156 = por %p154, %p155
      %s158 = sadd.s32 %s157, 1
      %p161 = scmp.eq.s32.totalorder %s18, 1
      %p162 = scmp.ne.s32.totalorder %s157, %s159
      %p163 = scmp.eq.s32.totalorder %s18, 0
      %p164 = por %p162, %p163
      %p165 = scmp.ne.s32.totalorder %s157, %s159
      %p166 = scmp.eq.s32.totalorder %s23, 1
      %p167 = por %p165, %p166
      %p168 = scmp.ne.s32.totalorder %s159, %s160
      %p169 = scmp.eq.s32.totalorder %s23, 0
      %p170 = por %p168, %p169
      %p171 = scmp.ne.s32.totalorder %s159, %s160
      %p172 = scmp.eq.s32.totalorder %s24, 1
      %p173 = por %p171, %p172
      %p175 = scmp.ne.s32.totalorder %s160, %s174
      %p176 = scmp.eq.s32.totalorder %s24, 0
      %p177 = por %p175, %p176
      %s178 = ssub.s32 %s18, %s25
      %p179 = scmp.eq.s32.totalorder %s178, 0
      %s181 = sadd.s32 %s180, 1
      %s182 = scalar_select %p179, %s180, %s181
      %p185 = pneg %p179
      %p186 = scmp.eq.s32.totalorder %s18, 1
      %p187 = por %p185, %p186
      %p188 = scmp.ne.s32.totalorder %s180, %s183
      %p189 = scmp.eq.s32.totalorder %s18, 0
      %p190 = por %p188, %p189
      %p191 = scmp.ne.s32.totalorder %s180, %s183
      %p192 = scmp.eq.s32.totalorder %s23, 1
      %p193 = por %p191, %p192
      %p194 = scmp.ne.s32.totalorder %s183, %s184
      %p195 = scmp.eq.s32.totalorder %s23, 0
      %p196 = por %p194, %p195
      %p197 = scmp.ne.s32.totalorder %s183, %s184
      %p198 = scmp.eq.s32.totalorder %s24, 1
      %p199 = por %p197, %p198
      %p201 = scmp.ne.s32.totalorder %s184, %s200
      %p202 = scmp.eq.s32.totalorder %s24, 0
      %p203 = por %p201, %p202
      %p204 = scmp.le.s32.totalorder 1, %s18
      %p205 = scmp.lt.s32.totalorder %s18, 3
      %p206 = pnand %p204, %p205
      %p207 = pneg %p206
      // Predicated region
      $region9: #{dnn_forward.1} parent=5 // pred_check
        _
      $region10: #{dnn_forward.1} parent=5 // pred_check_branch
        %209 = sbr.rel (%p206) target = $region12
      $region11: #{dnn_forward.1} parent=5 // pred_region
        %s210 = ssub.s32 %s18, 1
        // Predicated region
        $region13: #{dnn_forward.1} parent=11 // pred_check
          %p211 = pneg %p65
        $region14: #{dnn_forward.1} parent=11 // pred_check_branch
          %213 = sbr.rel (%p211) target = $region16
        $region15: #{dnn_forward.1} parent=11 // pred_region
          %s215 = ssub.s32 256, 256
          %216 = vsyncadd [#allocation5], %s215
          %s217 = sshll.u32 [#allocation4], 4
          %s218 = int_to_ptr.vmem [resolvable:$true] %s217
          %223 = dma.hbm_to_vmem [thread:$0]  %s1, 256, %s218, [#allocation5], 64, 64, 4
        $region16: #{dnn_forward.1} parent=11 // pred_fallthru
          _
        // Predicated region
        $region17: #{dnn_forward.1} parent=11 // pred_check
          %p224 = pneg %p86
        $region18: #{dnn_forward.1} parent=11 // pred_check_branch
          %226 = sbr.rel (%p224) target = $region20
        $region19: #{dnn_forward.1} parent=11 // pred_region
          _
        $region20: #{dnn_forward.1} parent=11 // pred_fallthru
          _
        // Predicated region
        $region21: #{dnn_forward.1} parent=11 // pred_check
          %p227 = pneg %p107
        $region22: #{dnn_forward.1} parent=11 // pred_check_branch
          %229 = sbr.rel (%p227) target = $region24
        $region23: #{dnn_forward.1} parent=11 // pred_region
          %s231 = ssub.s32 1024, 1024
          %232 = vsyncadd [#allocation5], %s231
          %s233 = sshll.u32 [#allocation6], 4
          %s234 = int_to_ptr.vmem [resolvable:$true] %s233
          %239 = dma.hbm_to_vmem [thread:$0]  %s3, 1024, %s234, [#allocation5], 64, 64, 4
        $region24: #{dnn_forward.1} parent=11 // pred_fallthru
          _
        // Predicated region
        $region25: #{dnn_forward.1} parent=11 // pred_check
          %p240 = pneg %p128
        $region26: #{dnn_forward.1} parent=11 // pred_check_branch
          %242 = sbr.rel (%p240) target = $region28
        $region27: #{dnn_forward.1} parent=11 // pred_region
          _
        $region28: #{dnn_forward.1} parent=11 // pred_fallthru
          _
        // Predicated region
        $region29: #{dnn_forward.1} parent=11 // pred_check
          %p243 = pneg %p149
        $region30: #{dnn_forward.1} parent=11 // pred_check_branch
          %245 = sbr.rel (%p243) target = $region32
        $region31: #{dnn_forward.1} parent=11 // pred_region
          %s247 = ssub.s32 1024, 1024
          %248 = vsyncadd [#allocation8], %s247
          %s249 = sshll.u32 [#allocation7], 4
          %s250 = int_to_ptr.vmem [resolvable:$true] %s249
          %255 = dma.hbm_to_vmem [thread:$0]  %s5, 1024, %s250, [#allocation8], 64, 64, 4
        $region32: #{dnn_forward.1} parent=11 // pred_fallthru
          _
        // Predicated region
        $region33: #{dnn_forward.1} parent=11 // pred_check
          %p256 = pneg %p170
        $region34: #{dnn_forward.1} parent=11 // pred_check_branch
          %258 = sbr.rel (%p256) target = $region36
        $region35: #{dnn_forward.1} parent=11 // pred_region
          _
        $region36: #{dnn_forward.1} parent=11 // pred_fallthru
          _
      $region12: #{dnn_forward.1} parent=5 // pred_fallthru
        _
      %p259 = scmp.lt.s32.totalorder %s18, 2
      // Predicated region
      $region37: #{dnn_forward.1} parent=5 // pred_check
        %p260 = pneg %p259
      $region38: #{dnn_forward.1} parent=5 // pred_check_branch
        %262 = sbr.rel (%p260) target = $region40
      $region39: #{dnn_forward.1} parent=5 // pred_region
        // Predicated region
        $region41: #{dnn_forward.1} parent=39 // pred_check
          %p263 = pneg %p38
        $region42: #{dnn_forward.1} parent=39 // pred_check_branch
          %265 = sbr.rel (%p263) target = $region44
        $region43: #{dnn_forward.1} parent=39 // pred_region
          %s266 = sand.u32 %s28, 1
          %s267 = scalar_lea.sflag [#allocation3], %s266
          %s268 = sand.u32 %s28, 1
          %s269 = smul.addr %s268, 16
          %s270 = scalar_lea.vmem [#allocation2], %s269
          %s271 = smul.u32 2, %s18
          %s272 = ssub.s32 3, %s271
          %p273 = scmp.lt.s32.totalorder %s272, 2
          %s274 = scalar_select %p273, %s272, 2
          %s275 = smul.u32 128, %s274
          %s277 = ssub.s32 256, %s275
          %278 = vsyncadd %s267, %s277
          %p279 = scmp.ne.s32.totalorder 0, %s275
          %s280 = smul.addr %s271, 128
          %s281 = scalar_lea.hbm %s0, %s280
          %s282 = smul.u32 8, %s274
          %s283 = sshll.u32 %s270, 4
          %s284 = int_to_ptr.vmem [resolvable:$true] %s283
          %s285 = sshll.u32 %s282, 4
          %289 = dma.hbm_to_vmem [thread:$0]  (%p279), %s281, %s285, %s284, %s267, 128, 128, 8
        $region44: #{dnn_forward.1} parent=39 // pred_fallthru
          _
      $region40: #{dnn_forward.1} parent=5 // pred_fallthru
        _
      %p290 = scmp.le.s32.totalorder 1, %s18
      %p291 = scmp.lt.s32.totalorder %s18, 3
      %p292 = pnand %p290, %p291
      %p293 = pneg %p292
      // Predicated region
      $region45: #{dnn_forward.1} parent=5 // pred_check
        _
      $region46: #{dnn_forward.1} parent=5 // pred_check_branch
        %295 = sbr.rel (%p292) target = $region48
      $region47: #{dnn_forward.1} parent=5 // pred_region
        %s296 = ssub.s32 %s18, 1
        %s297 = sand.u32 %s31, 1
        %s298 = scalar_lea.sflag [#allocation3], %s297
        %s299 = sand.u32 %s31, 1
        %s300 = smul.addr %s299, 16
        %s301 = scalar_lea.vmem [#allocation2], %s300
        // Predicated region
        $region49: #{dnn_forward.1} parent=47 // pred_check
          %p302 = pneg %p44
        $region50: #{dnn_forward.1} parent=47 // pred_check_branch
          %304 = sbr.rel (%p302) target = $region52
        $region51: #{dnn_forward.1} parent=47 // pred_region
          %305 = dma.done %s298, 256
        $region52: #{dnn_forward.1} parent=47 // pred_fallthru
          _
        // Predicated region
        $region53: #{dnn_forward.1} parent=47 // pred_check
          %p306 = pneg %p65
        $region54: #{dnn_forward.1} parent=47 // pred_check_branch
          %308 = sbr.rel (%p306) target = $region56
        $region55: #{dnn_forward.1} parent=47 // pred_region
          %309 = dma.done [#allocation5], 256
        $region56: #{dnn_forward.1} parent=47 // pred_fallthru
          _
        // Predicated region
        $region57: #{dnn_forward.1} parent=47 // pred_check
          %p310 = pneg %p107
        $region58: #{dnn_forward.1} parent=47 // pred_check_branch
          %312 = sbr.rel (%p310) target = $region60
        $region59: #{dnn_forward.1} parent=47 // pred_region
          %313 = dma.done [#allocation5], 1024
        $region60: #{dnn_forward.1} parent=47 // pred_fallthru
          _
        // Predicated region
        $region61: #{dnn_forward.1} parent=47 // pred_check
          %p314 = pneg %p149
        $region62: #{dnn_forward.1} parent=47 // pred_check_branch
          %316 = sbr.rel (%p314) target = $region64
        $region63: #{dnn_forward.1} parent=47 // pred_region
          %317 = dma.done [#allocation8], 1024
        $region64: #{dnn_forward.1} parent=47 // pred_fallthru
          _
        %s318 = sand.u32 %s31, 1
        %s319 = scalar_lea.sflag [#allocation3], %s318
        %s320 = sand.u32 %s31, 1
        %s321 = smul.addr %s320, 16
        %s322 = scalar_lea.vmem [#allocation2], %s321
        %p323 = pneg %p44
        %p324 = pneg %p41
        %p325 = pneg %p65
        %p326 = pneg %p62
        %p327 = pneg %p86
        %p328 = pneg %p83
        %p329 = pneg %p107
        %p330 = pneg %p104
        %p331 = pneg %p128
        %p332 = pneg %p125
        %p333 = pneg %p149
        %p334 = pneg %p146
        %p335 = pneg %p170
        %p336 = pneg %p167
        %p337 = pneg %p196
        %p338 = pneg %p193
        %s339 = sand.u32 %s183, 1
        %s340 = sand.u32 %s183, 1
        %s341 = smul.addr %s340, 16
        %s342 = scalar_lea.vmem [#allocation9], %s341
        %s343 = smul.u32 2, %s23
        %s344 = ssub.s32 3, %s343
        %p345 = scmp.lt.s32.totalorder %s344, 2
        %s346 = scalar_select %p345, %s344, 2
        %s347 = smul.u32 128, %s346
        %s348 = smul.u32 2, %s23
        %s349 = ssub.s32 3, %s348
        %p350 = scmp.lt.s32.totalorder %s349, 2
        %s351 = scalar_select %p350, %s349, 2
        %s352 = smul.u32 128, %s351
        %v354 = vld [vmem:[%s301] sm:$0xff]
        %v355 = vld [vmem:[%s301 + $0x8] sm:$0xff]
        %v356 = vpack.c.bf16 %v355, %v354
        %v357 = vld [vmem:[#allocation4] sm:$0xf]
        %v358 = vld [vmem:[#allocation4 + $0x4] sm:$0xf]
        %v359 = vld [vmem:[#allocation4 + $0x8] sm:$0xf]
        %v360 = vld [vmem:[#allocation4 + $0xc] sm:$0xf]
        %v361 = vld [vmem:[%s2] sm:$0x1]
        %v363 = vlaneseq
        %v364 = vshrl.u32 %v363, 7
        %v365 = vsub.s32 0, %v364
        %v366 = vrot.slane %v361, %v365
        %v372 = vunpack.c.l.b16 %v357
        %v373 = vunpack.c.l.b16 %v358
        %v374 = vunpack.c.l.b16 %v359
        %v375 = vunpack.c.l.b16 %v360
        %v376 = vpack.c.b16 %v373, %v372
        %v377 = vpack.c.b16 %v375, %v374
        %vm380 = vcmask 261120
        %v382 = vsel %vm380, %v356, 0
        %384 = vmatprep.subr.bf16.mxu0 0
        %385 = vmatpush1.bf16.msra.mxu0 %v376
        %386 = vmatprep.subr.bf16.mxu0 0
        %387 = vmatpush1.bf16.msra.mxu0 %v377
        %388 = vmatprep.subr.bf16.mxu0 0
        %389 = vmatpush1.bf16.msra.mxu0 0
        %390 = vmatprep.subr.bf16.mxu0 0
        %391 = vmatpush1.bf16.msra.mxu0 0
        %392 = vmatprep.subr.bf16.mxu0 0
        %393 = vmatpush1.bf16.msra.mxu0 0
        %394 = vmatprep.subr.bf16.mxu0 0
        %395 = vmatpush1.bf16.msra.mxu0 0
        %396 = vmatprep.subr.bf16.mxu0 0
        %397 = vmatpush1.bf16.msra.mxu0 0
        %398 = vmatprep.subr.bf16.mxu0 0
        %399 = vmatpush1.bf16.msra.mxu0 0
        %400 = vmatprep.subr.bf16.mxu0 0
        %401 = vmatpush1.bf16.msra.mxu0 0
        %402 = vmatprep.subr.bf16.mxu0 0
        %403 = vmatpush1.bf16.msra.mxu0 0
        %404 = vmatprep.subr.bf16.mxu0 0
        %405 = vmatpush1.bf16.msra.mxu0 0
        %406 = vmatprep.subr.bf16.mxu0 0
        %407 = vmatpush1.bf16.msra.mxu0 0
        %408 = vmatprep.subr.bf16.mxu0 0
        %409 = vmatpush1.bf16.msra.mxu0 0
        %410 = vmatprep.subr.bf16.mxu0 0
        %411 = vmatpush1.bf16.msra.mxu0 0
        %412 = vmatprep.subr.bf16.mxu0 0
        %413 = vmatpush1.bf16.msra.mxu0 0
        %414 = vmatprep.subr.bf16.mxu0 0
        %415 = vmatpush1.bf16.msra.mxu0 0
        %416 = vmatprep.mubr.bf16.mxu0 0
        %417 = vmatmul.mubr.bf16.gmra.mrb[0].mxu0 %v382
        %v418 = vpop.f32.mrb[0].mxu0
        %v419 = vadd.f32 %v366, %v418
        %v420 = vpop.f32.mrb[0].mxu0
        %v421 = vpop.f32.mrb[0].mxu0
        %v422 = vadd.f32 %v366, %v421
        %v423 = vpop.f32.mrb[0].mxu0
        %424 = vdwg.mxu0
        %v425 = vmax.f32 %v419, 0.0
        %v426 = vmax.f32 %v422, 0.0
        %v427 = vpack.c.bf16 %v426, %v425
        %v428 = vld [vmem:[#allocation6] sm:$0xf]
        %v429 = vld [vmem:[#allocation6 + $0x4] sm:$0xf]
        %v430 = vld [vmem:[#allocation6 + $0x8] sm:$0xf]
        %v431 = vld [vmem:[#allocation6 + $0xc] sm:$0xf]
        %v432 = vld [vmem:[#allocation6 + $0x10] sm:$0xf]
        %v433 = vld [vmem:[#allocation6 + $0x14] sm:$0xf]
        %v434 = vld [vmem:[#allocation6 + $0x18] sm:$0xf]
        %v435 = vld [vmem:[#allocation6 + $0x1c] sm:$0xf]
        %v436 = vld [vmem:[#allocation6 + $0x20] sm:$0xf]
        %v437 = vld [vmem:[#allocation6 + $0x24] sm:$0xf]
        %v438 = vld [vmem:[#allocation6 + $0x28] sm:$0xf]
        %v439 = vld [vmem:[#allocation6 + $0x2c] sm:$0xf]
        %v440 = vld [vmem:[#allocation6 + $0x30] sm:$0xf]
        %v441 = vld [vmem:[#allocation6 + $0x34] sm:$0xf]
        %v442 = vld [vmem:[#allocation6 + $0x38] sm:$0xf]
        %v443 = vld [vmem:[#allocation6 + $0x3c] sm:$0xf]
        %v444 = vld [vmem:[%s4] sm:$0x1]
        %v446 = vlaneseq
        %v447 = vshrl.u32 %v446, 7
        %v448 = vsub.s32 0, %v447
        %v449 = vrot.slane %v444, %v448
        %v467 = vunpack.c.l.b16 %v428
        %v468 = vunpack.c.l.b16 %v429
        %v469 = vunpack.c.l.b16 %v430
        %v470 = vunpack.c.l.b16 %v431
        %v471 = vunpack.c.l.b16 %v432
        %v472 = vunpack.c.l.b16 %v433
        %v473 = vunpack.c.l.b16 %v434
        %v474 = vunpack.c.l.b16 %v435
        %v475 = vunpack.c.l.b16 %v436
        %v476 = vunpack.c.l.b16 %v437
        %v477 = vunpack.c.l.b16 %v438
        %v478 = vunpack.c.l.b16 %v439
        %v479 = vunpack.c.l.b16 %v440
        %v480 = vunpack.c.l.b16 %v441
        %v481 = vunpack.c.l.b16 %v442
        %v482 = vunpack.c.l.b16 %v443
        %v483 = vpack.c.b16 %v468, %v467
        %v484 = vpack.c.b16 %v470, %v469
        %v485 = vpack.c.b16 %v472, %v471
        %v486 = vpack.c.b16 %v474, %v473
        %v487 = vpack.c.b16 %v476, %v475
        %v488 = vpack.c.b16 %v478, %v477
        %v489 = vpack.c.b16 %v480, %v479
        %v490 = vpack.c.b16 %v482, %v481
        %499 = vmatprep.subr.bf16.mxu0 0
        %500 = vmatpush1.bf16.msra.mxu0 %v483
        %501 = vmatprep.subr.bf16.mxu0 0
        %502 = vmatpush1.bf16.msra.mxu0 %v484
        %503 = vmatprep.subr.bf16.mxu0 0
        %504 = vmatpush1.bf16.msra.mxu0 %v485
        %505 = vmatprep.subr.bf16.mxu0 0
        %506 = vmatpush1.bf16.msra.mxu0 %v486
        %507 = vmatprep.subr.bf16.mxu0 0
        %508 = vmatpush1.bf16.msra.mxu0 %v487
        %509 = vmatprep.subr.bf16.mxu0 0
        %510 = vmatpush1.bf16.msra.mxu0 %v488
        %511 = vmatprep.subr.bf16.mxu0 0
        %512 = vmatpush1.bf16.msra.mxu0 %v489
        %513 = vmatprep.subr.bf16.mxu0 0
        %514 = vmatpush1.bf16.msra.mxu0 %v490
        %515 = vmatprep.subr.bf16.mxu0 0
        %516 = vmatpush1.bf16.msra.mxu0 0
        %517 = vmatprep.subr.bf16.mxu0 0
        %518 = vmatpush1.bf16.msra.mxu0 0
        %519 = vmatprep.subr.bf16.mxu0 0
        %520 = vmatpush1.bf16.msra.mxu0 0
        %521 = vmatprep.subr.bf16.mxu0 0
        %522 = vmatpush1.bf16.msra.mxu0 0
        %523 = vmatprep.subr.bf16.mxu0 0
        %524 = vmatpush1.bf16.msra.mxu0 0
        %525 = vmatprep.subr.bf16.mxu0 0
        %526 = vmatpush1.bf16.msra.mxu0 0
        %527 = vmatprep.subr.bf16.mxu0 0
        %528 = vmatpush1.bf16.msra.mxu0 0
        %529 = vmatprep.subr.bf16.mxu0 0
        %530 = vmatpush1.bf16.msra.mxu0 0
        %531 = vmatprep.mubr.bf16.mxu0 0
        %532 = vmatmul.mubr.bf16.gmra.mrb[0].mxu0 %v427
        %v533 = vpop.f32.mrb[0].mxu0
        %v534 = vadd.f32 %v449, %v533
        %v535 = vpop.f32.mrb[0].mxu0
        %v536 = vpop.f32.mrb[0].mxu0
        %v537 = vadd.f32 %v449, %v536
        %v538 = vpop.f32.mrb[0].mxu0
        %539 = vdwg.mxu0
        %v540 = vmax.f32 %v534, 0.0
        %v541 = vmax.f32 %v537, 0.0
        %v542 = vpack.c.bf16 %v541, %v540
        %v543 = vld [vmem:[#allocation7] sm:$0xf]
        %v544 = vld [vmem:[#allocation7 + $0x4] sm:$0xf]
        %v545 = vld [vmem:[#allocation7 + $0x8] sm:$0xf]
        %v546 = vld [vmem:[#allocation7 + $0xc] sm:$0xf]
        %v547 = vld [vmem:[#allocation7 + $0x10] sm:$0xf]
        %v548 = vld [vmem:[#allocation7 + $0x14] sm:$0xf]
        %v549 = vld [vmem:[#allocation7 + $0x18] sm:$0xf]
        %v550 = vld [vmem:[#allocation7 + $0x1c] sm:$0xf]
        %v551 = vld [vmem:[#allocation7 + $0x20] sm:$0xf]
        %v552 = vld [vmem:[#allocation7 + $0x24] sm:$0xf]
        %v553 = vld [vmem:[#allocation7 + $0x28] sm:$0xf]
        %v554 = vld [vmem:[#allocation7 + $0x2c] sm:$0xf]
        %v555 = vld [vmem:[#allocation7 + $0x30] sm:$0xf]
        %v556 = vld [vmem:[#allocation7 + $0x34] sm:$0xf]
        %v557 = vld [vmem:[#allocation7 + $0x38] sm:$0xf]
        %v558 = vld [vmem:[#allocation7 + $0x3c] sm:$0xf]
        %v559 = vld [vmem:[%s6] sm:$0x1]
        %v561 = vlaneseq
        %v562 = vshrl.u32 %v561, 7
        %v563 = vsub.s32 0, %v562
        %v564 = vrot.slane %v559, %v563
        %v582 = vunpack.c.l.b16 %v543
        %v583 = vunpack.c.l.b16 %v544
        %v584 = vunpack.c.l.b16 %v545
        %v585 = vunpack.c.l.b16 %v546
        %v586 = vunpack.c.l.b16 %v547
        %v587 = vunpack.c.l.b16 %v548
        %v588 = vunpack.c.l.b16 %v549
        %v589 = vunpack.c.l.b16 %v550
        %v590 = vunpack.c.l.b16 %v551
        %v591 = vunpack.c.l.b16 %v552
        %v592 = vunpack.c.l.b16 %v553
        %v593 = vunpack.c.l.b16 %v554
        %v594 = vunpack.c.l.b16 %v555
        %v595 = vunpack.c.l.b16 %v556
        %v596 = vunpack.c.l.b16 %v557
        %v597 = vunpack.c.l.b16 %v558
        %v598 = vpack.c.b16 %v583, %v582
        %v599 = vpack.c.b16 %v585, %v584
        %v600 = vpack.c.b16 %v587, %v586
        %v601 = vpack.c.b16 %v589, %v588
        %v602 = vpack.c.b16 %v591, %v590
        %v603 = vpack.c.b16 %v593, %v592
        %v604 = vpack.c.b16 %v595, %v594
        %v605 = vpack.c.b16 %v597, %v596
        %614 = vmatprep.subr.bf16.mxu0 0
        %615 = vmatpush1.bf16.msra.mxu0 %v598
        %616 = vmatprep.subr.bf16.mxu0 0
        %617 = vmatpush1.bf16.msra.mxu0 %v599
        %618 = vmatprep.subr.bf16.mxu0 0
        %619 = vmatpush1.bf16.msra.mxu0 %v600
        %620 = vmatprep.subr.bf16.mxu0 0
        %621 = vmatpush1.bf16.msra.mxu0 %v601
        %622 = vmatprep.subr.bf16.mxu0 0
        %623 = vmatpush1.bf16.msra.mxu0 %v602
        %624 = vmatprep.subr.bf16.mxu0 0
        %625 = vmatpush1.bf16.msra.mxu0 %v603
        %626 = vmatprep.subr.bf16.mxu0 0
        %627 = vmatpush1.bf16.msra.mxu0 %v604
        %628 = vmatprep.subr.bf16.mxu0 0
        %629 = vmatpush1.bf16.msra.mxu0 %v605
        %630 = vmatprep.subr.bf16.mxu0 0
        %631 = vmatpush1.bf16.msra.mxu0 0
        %632 = vmatprep.subr.bf16.mxu0 0
        %633 = vmatpush1.bf16.msra.mxu0 0
        %634 = vmatprep.subr.bf16.mxu0 0
        %635 = vmatpush1.bf16.msra.mxu0 0
        %636 = vmatprep.subr.bf16.mxu0 0
        %637 = vmatpush1.bf16.msra.mxu0 0
        %638 = vmatprep.subr.bf16.mxu0 0
        %639 = vmatpush1.bf16.msra.mxu0 0
        %640 = vmatprep.subr.bf16.mxu0 0
        %641 = vmatpush1.bf16.msra.mxu0 0
        %642 = vmatprep.subr.bf16.mxu0 0
        %643 = vmatpush1.bf16.msra.mxu0 0
        %644 = vmatprep.subr.bf16.mxu0 0
        %645 = vmatpush1.bf16.msra.mxu0 0
        %646 = vmatprep.mubr.bf16.mxu0 0
        %647 = vmatmul.mubr.bf16.gmra.mrb[0].mxu0 %v542
        %v648 = vpop.f32.mrb[0].mxu0
        %v649 = vadd.f32 %v564, %v648
        %v650 = vpop.f32.mrb[0].mxu0
        %v651 = vpop.f32.mrb[0].mxu0
        %v652 = vadd.f32 %v564, %v651
        %v653 = vpop.f32.mrb[0].mxu0
        %654 = vdwg.mxu0
        %v655 = vmax.f32 %v649, 0.0
        %v656 = vmax.f32 %v652, 0.0
        %657 = vst [vmem:[%s342] sm:$0xff] %v655
        %658 = vst [vmem:[%s342 + $0x8] sm:$0xff] %v656
        %s659 = sand.u32 %s183, 1
        %s660 = sand.u32 %s183, 1
        %s661 = smul.addr %s660, 16
        %s662 = scalar_lea.vmem [#allocation9], %s661
        // Predicated region
        $region65: #{dnn_forward.1} parent=47 // pred_check
          %p663 = pneg %p193
        $region66: #{dnn_forward.1} parent=47 // pred_check_branch
          %665 = sbr.rel (%p663) target = $region68
        $region67: #{dnn_forward.1} parent=47 // pred_region
          %s666 = smul.u32 2, %s23
          %s667 = ssub.s32 3, %s666
          %p668 = scmp.lt.s32.totalorder %s667, 2
          %s669 = scalar_select %p668, %s667, 2
          %s670 = smul.u32 128, %s669
          %p671 = scmp.ne.s32.totalorder 0, %s670
          %s672 = smul.addr %s666, 8
          %s673 = scalar_lea.vmem %s7, %s672
          // Predicated region
          $region69: #{dnn_forward.1} parent=67 // pred_check
            %p674 = pneg %p671
          $region70: #{dnn_forward.1} parent=67 // pred_check_branch
            %676 = sbr.rel (%p674) target = $region72
          $region71: #{dnn_forward.1} parent=67 // pred_region
            // Predicated region
            $region73: #{dnn_forward.1} parent=71 // pred_check
              _
            $region74: #{dnn_forward.1} parent=71 // pred_check_branch
              %678 = sbr.rel (0) target = $region76
            $region75: #{dnn_forward.1} parent=71 // pred_region
              // Predicated region
              $region95: #{dnn_forward.1} parent=75 // pred_check
                _
              $region96: #{dnn_forward.1} parent=75 // pred_check_branch
                %729 = sbr.rel (0) target = $region98
              $region97: #{dnn_forward.1} parent=75 // pred_region
                %s730 = sshrl.u32 %s669, 1
                // While loop
                $region99: #{dnn_forward.1} parent=97 // loop_pre_header
                  _
                $region100: #{dnn_forward.1} parent=97 // loop_header
                  %s732 = sphi 0, %s734
                  %p733 = scmp.ge.s32.totalorder %s732, %s730
                  %s737 = sphi 0, %s746
                  %s738 = sphi %s662, %s749
                  %s739 = sphi %s673, %s750
                $region101: #{dnn_forward.1} parent=97 // loop_header_branch
                  %736 = sbr.rel (%p733) target = $region105
                $region102: #{dnn_forward.1} parent=97 // loop_body
                  %v740 = vld [vmem:[%s738] sm:$0xff]
                  %741 = vst [vmem:[%s739] sm:$0xff] %v740
                  %v742 = vld [vmem:[%s738 + $0x8] sm:$0xff]
                  %743 = vst [vmem:[%s739 + $0x8] sm:$0xff] %v742
                  %s744 = sadd.s32 1, %s737
                  %p745 = scmp.ge.s32.totalorder %s744, %s730
                  %s746 = scalar_select %p745, 0, %s744
                  %s747 = smul.u32 %s746, 16
                  %s748 = smul.u32 %s746, 16
                  %s749 = scalar_lea.vmem %s662, %s747 [#allocation9]
                  %s750 = scalar_lea.vmem %s673, %s748
                $region103: #{dnn_forward.1} parent=97 // loop_footer
                  %s734 = sadd.s32 %s732, 1
                $region104: #{dnn_forward.1} parent=97 // loop_footer_branch
                  %731 = sbr.rel target = $region100
                $region105: #{dnn_forward.1} parent=97 // loop_exit
                  _
                %s751 = sshrl.u32 %s669, 1
                %s752 = sand.u32 %s669, 1
                %s753 = smul.u32 %s751, 2
                %s754 = smul.u32 8, %s753
                %s755 = scalar_lea.vmem %s662, %s754 [#allocation9]
                %s756 = smul.u32 8, %s753
                %s757 = scalar_lea.vmem %s673, %s756
                // While loop
                $region106: #{dnn_forward.1} parent=97 // loop_pre_header
                  _
                $region107: #{dnn_forward.1} parent=97 // loop_header
                  %s759 = sphi 0, %s761
                  %p760 = scmp.ge.s32.totalorder %s759, %s752
                  %s764 = sphi 0, %s771
                  %s765 = sphi %s755, %s774
                  %s766 = sphi %s757, %s775
                $region108: #{dnn_forward.1} parent=97 // loop_header_branch
                  %763 = sbr.rel (%p760) target = $region112
                $region109: #{dnn_forward.1} parent=97 // loop_body
                  %v767 = vld [vmem:[%s765] sm:$0xff]
                  %768 = vst [vmem:[%s766] sm:$0xff] %v767
                  %s769 = sadd.s32 1, %s764
                  %p770 = scmp.ge.s32.totalorder %s769, %s752
                  %s771 = scalar_select %p770, 0, %s769
                  %s772 = smul.u32 %s771, 8
                  %s773 = smul.u32 %s771, 8
                  %s774 = scalar_lea.vmem %s755, %s772 [#allocation9]
                  %s775 = scalar_lea.vmem %s757, %s773
                $region110: #{dnn_forward.1} parent=97 // loop_footer
                  %s761 = sadd.s32 %s759, 1
                $region111: #{dnn_forward.1} parent=97 // loop_footer_branch
                  %758 = sbr.rel target = $region107
                $region112: #{dnn_forward.1} parent=97 // loop_exit
                  _
              $region98: #{dnn_forward.1} parent=75 // pred_fallthru
                _
              // Predicated region
              $region113: #{dnn_forward.1} parent=75 // pred_check
                _
              $region114: #{dnn_forward.1} parent=75 // pred_check_branch
                %777 = sbr.rel target = $region116
              $region115: #{dnn_forward.1} parent=75 // pred_region
                _
              $region116: #{dnn_forward.1} parent=75 // pred_fallthru
                _
            $region76: #{dnn_forward.1} parent=71 // pred_fallthru
              _
            // Predicated region
            $region77: #{dnn_forward.1} parent=71 // pred_check
              _
            $region78: #{dnn_forward.1} parent=71 // pred_check_branch
              %680 = sbr.rel target = $region80
            $region79: #{dnn_forward.1} parent=71 // pred_region
              %s682 = sshrl.u32 %s669, 1
              // While loop
              $region81: #{dnn_forward.1} parent=79 // loop_pre_header
                _
              $region82: #{dnn_forward.1} parent=79 // loop_header
                %s684 = sphi 0, %s686
                %p685 = scmp.ge.s32.totalorder %s684, %s682
                %s689 = sphi 0, %s698
                %s690 = sphi %s662, %s701
                %s691 = sphi %s673, %s702
              $region83: #{dnn_forward.1} parent=79 // loop_header_branch
                %688 = sbr.rel (%p685) target = $region87
              $region84: #{dnn_forward.1} parent=79 // loop_body
                %v692 = vld [vmem:[%s690] sm:$0xff]
                %693 = vst [vmem:[%s691] sm:$0xff] %v692
                %v694 = vld [vmem:[%s690 + $0x8] sm:$0xff]
                %695 = vst [vmem:[%s691 + $0x8] sm:$0xff] %v694
                %s696 = sadd.s32 1, %s689
                %p697 = scmp.ge.s32.totalorder %s696, %s682
                %s698 = scalar_select %p697, 0, %s696
                %s699 = smul.u32 %s698, 16
                %s700 = smul.u32 %s698, 16
                %s701 = scalar_lea.vmem %s662, %s699 [#allocation9]
                %s702 = scalar_lea.vmem %s673, %s700
              $region85: #{dnn_forward.1} parent=79 // loop_footer
                %s686 = sadd.s32 %s684, 1
              $region86: #{dnn_forward.1} parent=79 // loop_footer_branch
                %683 = sbr.rel target = $region82
              $region87: #{dnn_forward.1} parent=79 // loop_exit
                _
              %s703 = sshrl.u32 %s669, 1
              %s704 = sand.u32 %s669, 1
              %s705 = smul.u32 %s703, 2
              %s706 = smul.u32 8, %s705
              %s707 = scalar_lea.vmem %s662, %s706 [#allocation9]
              %s708 = smul.u32 8, %s705
              %s709 = scalar_lea.vmem %s673, %s708
              // While loop
              $region88: #{dnn_forward.1} parent=79 // loop_pre_header
                _
              $region89: #{dnn_forward.1} parent=79 // loop_header
                %s711 = sphi 0, %s713
                %p712 = scmp.ge.s32.totalorder %s711, %s704
                %s716 = sphi 0, %s723
                %s717 = sphi %s707, %s726
                %s718 = sphi %s709, %s727
              $region90: #{dnn_forward.1} parent=79 // loop_header_branch
                %715 = sbr.rel (%p712) target = $region94
              $region91: #{dnn_forward.1} parent=79 // loop_body
                %v719 = vld [vmem:[%s717] sm:$0xff]
                %720 = vst [vmem:[%s718] sm:$0xff] %v719
                %s721 = sadd.s32 1, %s716
                %p722 = scmp.ge.s32.totalorder %s721, %s704
                %s723 = scalar_select %p722, 0, %s721
                %s724 = smul.u32 %s723, 8
                %s725 = smul.u32 %s723, 8
                %s726 = scalar_lea.vmem %s707, %s724 [#allocation9]
                %s727 = scalar_lea.vmem %s709, %s725
              $region92: #{dnn_forward.1} parent=79 // loop_footer
                %s713 = sadd.s32 %s711, 1
              $region93: #{dnn_forward.1} parent=79 // loop_footer_branch
                %710 = sbr.rel target = $region89
              $region94: #{dnn_forward.1} parent=79 // loop_exit
                _
            $region80: #{dnn_forward.1} parent=71 // pred_fallthru
              _
          $region72: #{dnn_forward.1} parent=67 // pred_fallthru
            _
          %778 = vnop
        $region68: #{dnn_forward.1} parent=47 // pred_fallthru
          _
      $region48: #{dnn_forward.1} parent=5 // pred_fallthru
        _
      %p779 = scmp.le.s32.totalorder 2, %s18
      // Predicated region
      $region117: #{dnn_forward.1} parent=5 // pred_check
        %p780 = pneg %p779
      $region118: #{dnn_forward.1} parent=5 // pred_check_branch
        %782 = sbr.rel (%p780) target = $region120
      $region119: #{dnn_forward.1} parent=5 // pred_region
        %s783 = ssub.s32 %s18, 2
        // Predicated region
        $region121: #{dnn_forward.1} parent=119 // pred_check
          %p784 = pneg %p199
        $region122: #{dnn_forward.1} parent=119 // pred_check_branch
          %786 = sbr.rel (%p784) target = $region124
        $region123: #{dnn_forward.1} parent=119 // pred_region
          %s787 = sand.u32 %s184, 1
          %s788 = sand.u32 %s184, 1
          %s789 = smul.addr %s788, 16
          %s790 = scalar_lea.vmem [#allocation9], %s789
        $region124: #{dnn_forward.1} parent=119 // pred_fallthru
          _
      $region120: #{dnn_forward.1} parent=5 // pred_fallthru
        _
    $region6: #{dnn_forward.1} parent=1 // loop_footer
      %s22 = sadd.s32 1, %s18
    $region7: #{dnn_forward.1} parent=1 // loop_footer_branch
      %17 = sbr.rel target = $region3
    $region8: #{dnn_forward.1} parent=1 // loop_exit
      _
    %791 = vsyncpa [#allocation3], 1
    %s792 = scalar_lea.sflag [#allocation3], 1
    %793 = vsyncpa %s792, 1
    %794 = vsyncpa [#allocation5], 1
    %795 = vsyncpa [#allocation8], 1

// kernel: dnn_forward.1
$region0: #{dnn_forward.1}
  #allocation0 [shape = 'u32[]', space=smem, size = 0x4, offset = 0x4, fixed_abs, tag = 'smem constant byte address 0x4 - core index']
  #allocation1 [shape = 'u32[144,128]{1,0:T(1,128)}', space=vmem, size = 0x12000, scoped, tag = 'internal scratch']
  %s0 = inlined_call_operand.hbm [shape: f32[20,32], index: 0, kind: input, shape index: {}]
  %s1 = inlined_call_operand.hbm [shape: bf16[32,128], index: 1, kind: input, shape index: {}]
  %s2 = inlined_call_operand.vmem [shape: f32[1,128], index: 2, kind: input, shape index: {}]
  %s3 = inlined_call_operand.hbm [shape: bf16[128,128], index: 3, kind: input, shape index: {}]
  %s4 = inlined_call_operand.vmem [shape: f32[1,128], index: 4, kind: input, shape index: {}]
  %s5 = inlined_call_operand.hbm [shape: bf16[128,128], index: 5, kind: input, shape index: {}]
  %s6 = inlined_call_operand.vmem [shape: f32[1,128], index: 6, kind: input, shape index: {}]
  %s7 = inlined_call_operand.vmem [shape: f32[20,128], index: 7, kind: output, shape index: {}]
  %s8 = sld [smem:[#allocation0]]
  $region125: #{dnn_forward.1} parent=0
    _
  %s10 = ssub.s32 1, %s8
  %s11 = scalar_select 0, %s10, %s8
  $region1: #{dnn_forward.1} parent=0
    #allocation2 [shape = 'u8[16384]{0}', space=vmem, size = 0x4000, scoped, tag = 'input window, operand 0']
    #allocation3 [shape = 's32[2]{0}', space=sflag, size = 0x8, scoped, tag = 'scoped memory for dnn_forward.1']
    #allocation4 [shape = 'u8[8192]{0}', space=vmem, size = 0x2000, scoped, tag = 'input window, operand 1, single buffered']
    #allocation5 [shape = 's32[1]{0}', space=sflag, size = 0x4, scoped, tag = 'scoped memory for dnn_forward.1']
    #allocation6 [shape = 'u8[32768]{0}', space=vmem, size = 0x8000, scoped, tag = 'input window, operand 3, single buffered']
    #allocation7 [shape = 'u8[32768]{0}', space=vmem, size = 0x8000, scoped, tag = 'input window, operand 5, single buffered']
    #allocation8 [shape = 's32[1]{0}', space=sflag, size = 0x4, scoped, tag = 'scoped memory for dnn_forward.1']
    #allocation9 [shape = 'u8[16384]{0}', space=vmem, size = 0x4000, scoped, tag = 'output window, operand 0']
    %12 = vsyncpa [#allocation3], 0
    %s13 = scalar_lea.sflag [#allocation3], 1
    %14 = vsyncpa %s13, 0
    %15 = vsyncpa [#allocation5], 0
    %16 = vsyncpa [#allocation8], 0
    loop: start=0, step=1, limit=4
    $region2: #{dnn_forward.1} parent=1 // loop_pre_header
      _
    $region3: #{dnn_forward.1} parent=1 // loop_header
      %s18 = sphi 0, %s22
      %p19 = scmp.ge.s32.totalorder %s18, 4
      %s28 = sphi 0, %s30
      %s31 = sphi 0, %s28
      %s32 = sphi 0, %s31
      %s48 = sphi 0, %s32
      %s52 = sphi 0, %s52
      %s54 = sphi 0, %s52
      %s55 = sphi 0, %s54
      %s69 = sphi 0, %s55
      %s73 = sphi 0, %s73
      %s75 = sphi 0, %s73
      %s76 = sphi 0, %s75
      %s90 = sphi 0, %s76
      %s94 = sphi 0, %s94
      %s96 = sphi 0, %s94
      %s97 = sphi 0, %s96
      %s111 = sphi 0, %s97
      %s115 = sphi 0, %s115
      %s117 = sphi 0, %s115
      %s118 = sphi 0, %s117
      %s132 = sphi 0, %s118
      %s136 = sphi 0, %s136
      %s138 = sphi 0, %s136
      %s139 = sphi 0, %s138
      %s153 = sphi 0, %s139
      %s157 = sphi 0, %s157
      %s159 = sphi 0, %s157
      %s160 = sphi 0, %s159
      %s174 = sphi 0, %s160
      %s180 = sphi 0, %s182
      %s183 = sphi 0, %s180
      %s184 = sphi 0, %s183
      %s200 = sphi 0, %s184
    $region4: #{dnn_forward.1} parent=1 // loop_header_branch
      %21 = sbr.rel (%p19) target = $region8
    $region5: #{dnn_forward.1} parent=1 // loop_body
      %s23 = ssub.s32 %s18, 1
      %s24 = ssub.s32 %s18, 2
      %s25 = sadd.s32 %s18, 1
      %s26 = ssub.s32 %s18, %s25
      %p27 = scmp.eq.s32.totalorder %s26, 0
      %s29 = sadd.s32 %s28, 1
      %s30 = scalar_select %p27, %s28, %s29
      %p33 = pneg %p27
      %p34 = scmp.eq.s32.totalorder %s18, 1
      %p35 = por %p33, %p34
      %p36 = scmp.ne.s32.totalorder %s28, %s31
      %p37 = scmp.eq.s32.totalorder %s18, 0
      %p38 = por %p36, %p37
      %p39 = scmp.ne.s32.totalorder %s28, %s31
      %p40 = scmp.eq.s32.totalorder %s23, 1
      %p41 = por %p39, %p40
      %p42 = scmp.ne.s32.totalorder %s31, %s32
      %p43 = scmp.eq.s32.totalorder %s23, 0
      %p44 = por %p42, %p43
      %p45 = scmp.ne.s32.totalorder %s31, %s32
      %p46 = scmp.eq.s32.totalorder %s24, 1
      %p47 = por %p45, %p46
      %p49 = scmp.ne.s32.totalorder %s32, %s48
      %p50 = scmp.eq.s32.totalorder %s24, 0
      %p51 = por %p49, %p50
      %s53 = sadd.s32 %s52, 1
      %p56 = scmp.eq.s32.totalorder %s18, 1
      %p57 = scmp.ne.s32.totalorder %s52, %s54
      %p58 = scmp.eq.s32.totalorder %s18, 0
      %p59 = por %p57, %p58
      %p60 = scmp.ne.s32.totalorder %s52, %s54
      %p61 = scmp.eq.s32.totalorder %s23, 1
      %p62 = por %p60, %p61
      %p63 = scmp.ne.s32.totalorder %s54, %s55
      %p64 = scmp.eq.s32.totalorder %s23, 0
      %p65 = por %p63, %p64
      %p66 = scmp.ne.s32.totalorder %s54, %s55
      %p67 = scmp.eq.s32.totalorder %s24, 1
      %p68 = por %p66, %p67
      %p70 = scmp.ne.s32.totalorder %s55, %s69
      %p71 = scmp.eq.s32.totalorder %s24, 0
      %p72 = por %p70, %p71
      %s74 = sadd.s32 %s73, 1
      %p77 = scmp.eq.s32.totalorder %s18, 1
      %p78 = scmp.ne.s32.totalorder %s73, %s75
      %p79 = scmp.eq.s32.totalorder %s18, 0
      %p80 = por %p78, %p79
      %p81 = scmp.ne.s32.totalorder %s73, %s75
      %p82 = scmp.eq.s32.totalorder %s23, 1
      %p83 = por %p81, %p82
      %p84 = scmp.ne.s32.totalorder %s75, %s76
      %p85 = scmp.eq.s32.totalorder %s23, 0
      %p86 = por %p84, %p85
      %p87 = scmp.ne.s32.totalorder %s75, %s76
      %p88 = scmp.eq.s32.totalorder %s24, 1
      %p89 = por %p87, %p88
      %p91 = scmp.ne.s32.totalorder %s76, %s90
      %p92 = scmp.eq.s32.totalorder %s24, 0
      %p93 = por %p91, %p92
      %s95 = sadd.s32 %s94, 1
      %p98 = scmp.eq.s32.totalorder %s18, 1
      %p99 = scmp.ne.s32.totalorder %s94, %s96
      %p100 = scmp.eq.s32.totalorder %s18, 0
      %p101 = por %p99, %p100
      %p102 = scmp.ne.s32.totalorder %s94, %s96
      %p103 = scmp.eq.s32.totalorder %s23, 1
      %p104 = por %p102, %p103
      %p105 = scmp.ne.s32.totalorder %s96, %s97
      %p106 = scmp.eq.s32.totalorder %s23, 0
      %p107 = por %p105, %p106
      %p108 = scmp.ne.s32.totalorder %s96, %s97
      %p109 = scmp.eq.s32.totalorder %s24, 1
      %p110 = por %p108, %p109
      %p112 = scmp.ne.s32.totalorder %s97, %s111
      %p113 = scmp.eq.s32.totalorder %s24, 0
      %p114 = por %p112, %p113
      %s116 = sadd.s32 %s115, 1
      %p119 = scmp.eq.s32.totalorder %s18, 1
      %p120 = scmp.ne.s32.totalorder %s115, %s117
      %p121 = scmp.eq.s32.totalorder %s18, 0
      %p122 = por %p120, %p121
      %p123 = scmp.ne.s32.totalorder %s115, %s117
      %p124 = scmp.eq.s32.totalorder %s23, 1
      %p125 = por %p123, %p124
      %p126 = scmp.ne.s32.totalorder %s117, %s118
      %p127 = scmp.eq.s32.totalorder %s23, 0
      %p128 = por %p126, %p127
      %p129 = scmp.ne.s32.totalorder %s117, %s118
      %p130 = scmp.eq.s32.totalorder %s24, 1
      %p131 = por %p129, %p130
      %p133 = scmp.ne.s32.totalorder %s118, %s132
      %p134 = scmp.eq.s32.totalorder %s24, 0
      %p135 = por %p133, %p134
      %s137 = sadd.s32 %s136, 1
      %p140 = scmp.eq.s32.totalorder %s18, 1
      %p141 = scmp.ne.s32.totalorder %s136, %s138
      %p142 = scmp.eq.s32.totalorder %s18, 0
      %p143 = por %p141, %p142
      %p144 = scmp.ne.s32.totalorder %s136, %s138
      %p145 = scmp.eq.s32.totalorder %s23, 1
      %p146 = por %p144, %p145
      %p147 = scmp.ne.s32.totalorder %s138, %s139
      %p148 = scmp.eq.s32.totalorder %s23, 0
      %p149 = por %p147, %p148
      %p150 = scmp.ne.s32.totalorder %s138, %s139
      %p151 = scmp.eq.s32.totalorder %s24, 1
      %p152 = por %p150, %p151
      %p154 = scmp.ne.s32.totalorder %s139, %s153
      %p155 = scmp.eq.s32.totalorder %s24, 0
      %p156 = por %p154, %p155
      %s158 = sadd.s32 %s157, 1
      %p161 = scmp.eq.s32.totalorder %s18, 1
      %p162 = scmp.ne.s32.totalorder %s157, %s159
      %p163 = scmp.eq.s32.totalorder %s18, 0
      %p164 = por %p162, %p163
      %p165 = scmp.ne.s32.totalorder %s157, %s159
      %p166 = scmp.eq.s32.totalorder %s23, 1
      %p167 = por %p165, %p166
      %p168 = scmp.ne.s32.totalorder %s159, %s160
      %p169 = scmp.eq.s32.totalorder %s23, 0
      %p170 = por %p168, %p169
      %p171 = scmp.ne.s32.totalorder %s159, %s160
      %p172 = scmp.eq.s32.totalorder %s24, 1
      %p173 = por %p171, %p172
      %p175 = scmp.ne.s32.totalorder %s160, %s174
      %p176 = scmp.eq.s32.totalorder %s24, 0
      %p177 = por %p175, %p176
      %s178 = ssub.s32 %s18, %s25
      %p179 = scmp.eq.s32.totalorder %s178, 0
      %s181 = sadd.s32 %s180, 1
      %s182 = scalar_select %p179, %s180, %s181
      %p185 = pneg %p179
      %p186 = scmp.eq.s32.totalorder %s18, 1
      %p187 = por %p185, %p186
      %p188 = scmp.ne.s32.totalorder %s180, %s183
      %p189 = scmp.eq.s32.totalorder %s18, 0
      %p190 = por %p188, %p189
      %p191 = scmp.ne.s32.totalorder %s180, %s183
      %p192 = scmp.eq.s32.totalorder %s23, 1
      %p193 = por %p191, %p192
      %p194 = scmp.ne.s32.totalorder %s183, %s184
      %p195 = scmp.eq.s32.totalorder %s23, 0
      %p196 = por %p194, %p195
      %p197 = scmp.ne.s32.totalorder %s183, %s184
      %p198 = scmp.eq.s32.totalorder %s24, 1
      %p199 = por %p197, %p198
      %p201 = scmp.ne.s32.totalorder %s184, %s200
      %p202 = scmp.eq.s32.totalorder %s24, 0
      %p203 = por %p201, %p202
      %p204 = scmp.le.s32.totalorder 1, %s18
      %p205 = scmp.lt.s32.totalorder %s18, 3
      %p206 = pnand %p204, %p205
      %p207 = pneg %p206
      // Predicated region
      $region9: #{dnn_forward.1} parent=5 // pred_check
        _
      $region10: #{dnn_forward.1} parent=5 // pred_check_branch
        %209 = sbr.rel (%p206) target = $region12
      $region11: #{dnn_forward.1} parent=5 // pred_region
        %s210 = ssub.s32 %s18, 1
        // Predicated region
        $region13: #{dnn_forward.1} parent=11 // pred_check
          %p211 = pneg %p65
        $region14: #{dnn_forward.1} parent=11 // pred_check_branch
          %213 = sbr.rel (%p211) target = $region16
        $region15: #{dnn_forward.1} parent=11 // pred_region
          %s215 = ssub.s32 256, 256
          %216 = vsyncadd [#allocation5], %s215
          %s217 = sshll.u32 [#allocation4], 4
          %s218 = int_to_ptr.vmem [resolvable:$true] %s217
          %223 = dma.hbm_to_vmem [thread:$0]  %s1, 256, %s218, [#allocation5], 64, 64, 4
        $region16: #{dnn_forward.1} parent=11 // pred_fallthru
          _
        // Predicated region
        $region17: #{dnn_forward.1} parent=11 // pred_check
          %p224 = pneg %p86
        $region18: #{dnn_forward.1} parent=11 // pred_check_branch
          %226 = sbr.rel (%p224) target = $region20
        $region19: #{dnn_forward.1} parent=11 // pred_region
          _
        $region20: #{dnn_forward.1} parent=11 // pred_fallthru
          _
        // Predicated region
        $region21: #{dnn_forward.1} parent=11 // pred_check
          %p227 = pneg %p107
        $region22: #{dnn_forward.1} parent=11 // pred_check_branch
          %229 = sbr.rel (%p227) target = $region24
        $region23: #{dnn_forward.1} parent=11 // pred_region
          %s231 = ssub.s32 1024, 1024
          %232 = vsyncadd [#allocation5], %s231
          %s233 = sshll.u32 [#allocation6], 4
          %s234 = int_to_ptr.vmem [resolvable:$true] %s233
          %239 = dma.hbm_to_vmem [thread:$0]  %s3, 1024, %s234, [#allocation5], 64, 64, 4
        $region24: #{dnn_forward.1} parent=11 // pred_fallthru
          _
        // Predicated region
        $region25: #{dnn_forward.1} parent=11 // pred_check
          %p240 = pneg %p128
        $region26: #{dnn_forward.1} parent=11 // pred_check_branch
          %242 = sbr.rel (%p240) target = $region28
        $region27: #{dnn_forward.1} parent=11 // pred_region
          _
        $region28: #{dnn_forward.1} parent=11 // pred_fallthru
          _
        // Predicated region
        $region29: #{dnn_forward.1} parent=11 // pred_check
          %p243 = pneg %p149
        $region30: #{dnn_forward.1} parent=11 // pred_check_branch
          %245 = sbr.rel (%p243) target = $region32
        $region31: #{dnn_forward.1} parent=11 // pred_region
          %s247 = ssub.s32 1024, 1024
          %248 = vsyncadd [#allocation8], %s247
          %s249 = sshll.u32 [#allocation7], 4
          %s250 = int_to_ptr.vmem [resolvable:$true] %s249
          %255 = dma.hbm_to_vmem [thread:$0]  %s5, 1024, %s250, [#allocation8], 64, 64, 4
        $region32: #{dnn_forward.1} parent=11 // pred_fallthru
          _
        // Predicated region
        $region33: #{dnn_forward.1} parent=11 // pred_check
          %p256 = pneg %p170
        $region34: #{dnn_forward.1} parent=11 // pred_check_branch
          %258 = sbr.rel (%p256) target = $region36
        $region35: #{dnn_forward.1} parent=11 // pred_region
          _
        $region36: #{dnn_forward.1} parent=11 // pred_fallthru
          _
      $region12: #{dnn_forward.1} parent=5 // pred_fallthru
        _
      %p259 = scmp.lt.s32.totalorder %s18, 2
      // Predicated region
      $region37: #{dnn_forward.1} parent=5 // pred_check
        %p260 = pneg %p259
      $region38: #{dnn_forward.1} parent=5 // pred_check_branch
        %262 = sbr.rel (%p260) target = $region40
      $region39: #{dnn_forward.1} parent=5 // pred_region
        // Predicated region
        $region41: #{dnn_forward.1} parent=39 // pred_check
          %p263 = pneg %p38
        $region42: #{dnn_forward.1} parent=39 // pred_check_branch
          %265 = sbr.rel (%p263) target = $region44
        $region43: #{dnn_forward.1} parent=39 // pred_region
          %s266 = sand.u32 %s28, 1
          %s267 = scalar_lea.sflag [#allocation3], %s266
          %s268 = sand.u32 %s28, 1
          %s269 = smul.addr %s268, 16
          %s270 = scalar_lea.vmem [#allocation2], %s269
          %s271 = smul.u32 2, %s18
          %s272 = ssub.s32 3, %s271
          %p273 = scmp.lt.s32.totalorder %s272, 2
          %s274 = scalar_select %p273, %s272, 2
          %s275 = smul.u32 128, %s274
          %s277 = ssub.s32 256, %s275
          %278 = vsyncadd %s267, %s277
          %p279 = scmp.ne.s32.totalorder 0, %s275
          %s280 = smul.addr %s271, 128
          %s281 = scalar_lea.hbm %s0, %s280
          %s282 = smul.u32 8, %s274
          %s283 = sshll.u32 %s270, 4
          %s284 = int_to_ptr.vmem [resolvable:$true] %s283
          %s285 = sshll.u32 %s282, 4
          %289 = dma.hbm_to_vmem [thread:$0]  (%p279), %s281, %s285, %s284, %s267, 128, 128, 8
        $region44: #{dnn_forward.1} parent=39 // pred_fallthru
          _
      $region40: #{dnn_forward.1} parent=5 // pred_fallthru
        _
      %p290 = scmp.le.s32.totalorder 1, %s18
      %p291 = scmp.lt.s32.totalorder %s18, 3
      %p292 = pnand %p290, %p291
      %p293 = pneg %p292
      // Predicated region
      $region45: #{dnn_forward.1} parent=5 // pred_check
        _
      $region46: #{dnn_forward.1} parent=5 // pred_check_branch
        %295 = sbr.rel (%p292) target = $region48
      $region47: #{dnn_forward.1} parent=5 // pred_region
        %s296 = ssub.s32 %s18, 1
        %s297 = sand.u32 %s31, 1
        %s298 = scalar_lea.sflag [#allocation3], %s297
        %s299 = sand.u32 %s31, 1
        %s300 = smul.addr %s299, 16
        %s301 = scalar_lea.vmem [#allocation2], %s300
        // Predicated region
        $region49: #{dnn_forward.1} parent=47 // pred_check
          %p302 = pneg %p44
        $region50: #{dnn_forward.1} parent=47 // pred_check_branch
          %304 = sbr.rel (%p302) target = $region52
        $region51: #{dnn_forward.1} parent=47 // pred_region
          %305 = dma.done %s298, 256
        $region52: #{dnn_forward.1} parent=47 // pred_fallthru
          _
        // Predicated region
        $region53: #{dnn_forward.1} parent=47 // pred_check
          %p306 = pneg %p65
        $region54: #{dnn_forward.1} parent=47 // pred_check_branch
          %308 = sbr.rel (%p306) target = $region56
        $region55: #{dnn_forward.1} parent=47 // pred_region
          %309 = dma.done [#allocation5], 256
        $region56: #{dnn_forward.1} parent=47 // pred_fallthru
          _
        // Predicated region
        $region57: #{dnn_forward.1} parent=47 // pred_check
          %p310 = pneg %p107
        $region58: #{dnn_forward.1} parent=47 // pred_check_branch
          %312 = sbr.rel (%p310) target = $region60
        $region59: #{dnn_forward.1} parent=47 // pred_region
          %313 = dma.done [#allocation5], 1024
        $region60: #{dnn_forward.1} parent=47 // pred_fallthru
          _
        // Predicated region
        $region61: #{dnn_forward.1} parent=47 // pred_check
          %p314 = pneg %p149
        $region62: #{dnn_forward.1} parent=47 // pred_check_branch
          %316 = sbr.rel (%p314) target = $region64
        $region63: #{dnn_forward.1} parent=47 // pred_region
          %317 = dma.done [#allocation8], 1024
        $region64: #{dnn_forward.1} parent=47 // pred_fallthru
          _
        %s318 = sand.u32 %s31, 1
        %s319 = scalar_lea.sflag [#allocation3], %s318
        %s320 = sand.u32 %s31, 1
        %s321 = smul.addr %s320, 16
        %s322 = scalar_lea.vmem [#allocation2], %s321
        %p323 = pneg %p44
        %p324 = pneg %p41
        %p325 = pneg %p65
        %p326 = pneg %p62
        %p327 = pneg %p86
        %p328 = pneg %p83
        %p329 = pneg %p107
        %p330 = pneg %p104
        %p331 = pneg %p128
        %p332 = pneg %p125
        %p333 = pneg %p149
        %p334 = pneg %p146
        %p335 = pneg %p170
        %p336 = pneg %p167
        %p337 = pneg %p196
        %p338 = pneg %p193
        %s339 = sand.u32 %s183, 1
        %s340 = sand.u32 %s183, 1
        %s341 = smul.addr %s340, 16
        %s342 = scalar_lea.vmem [#allocation9], %s341
        %s343 = smul.u32 2, %s23
        %s344 = ssub.s32 3, %s343
        %p345 = scmp.lt.s32.totalorder %s344, 2
        %s346 = scalar_select %p345, %s344, 2
        %s347 = smul.u32 128, %s346
        %s348 = smul.u32 2, %s23
        %s349 = ssub.s32 3, %s348
        %p350 = scmp.lt.s32.totalorder %s349, 2
        %s351 = scalar_select %p350, %s349, 2
        %s352 = smul.u32 128, %s351
        %v354 = vld [vmem:[%s301] sm:$0xff]
        %v355 = vld [vmem:[%s301 + $0x8] sm:$0xff]
        %v356 = vpack.c.bf16 %v355, %v354
        %v357 = vld [vmem:[#allocation4] sm:$0xf]
        %v358 = vld [vmem:[#allocation4 + $0x4] sm:$0xf]
        %v359 = vld [vmem:[#allocation4 + $0x8] sm:$0xf]
        %v360 = vld [vmem:[#allocation4 + $0xc] sm:$0xf]
        %v361 = vld [vmem:[%s2] sm:$0x1]
        %v363 = vlaneseq
        %v364 = vshrl.u32 %v363, 7
        %v365 = vsub.s32 0, %v364
        %v366 = vrot.slane %v361, %v365
        %v372 = vunpack.c.l.b16 %v357
        %v373 = vunpack.c.l.b16 %v358
        %v374 = vunpack.c.l.b16 %v359
        %v375 = vunpack.c.l.b16 %v360
        %v376 = vpack.c.b16 %v373, %v372
        %v377 = vpack.c.b16 %v375, %v374
        %vm380 = vcmask 261120
        %v382 = vsel %vm380, %v356, 0
        %384 = vmatprep.subr.bf16.mxu0 0
        %385 = vmatpush1.bf16.msra.mxu0 %v376
        %386 = vmatprep.subr.bf16.mxu0 0
        %387 = vmatpush1.bf16.msra.mxu0 %v377
        %388 = vmatprep.subr.bf16.mxu0 0
        %389 = vmatpush1.bf16.msra.mxu0 0
        %390 = vmatprep.subr.bf16.mxu0 0
        %391 = vmatpush1.bf16.msra.mxu0 0
        %392 = vmatprep.subr.bf16.mxu0 0
        %393 = vmatpush1.bf16.msra.mxu0 0
        %394 = vmatprep.subr.bf16.mxu0 0
        %395 = vmatpush1.bf16.msra.mxu0 0
        %396 = vmatprep.subr.bf16.mxu0 0
        %397 = vmatpush1.bf16.msra.mxu0 0
        %398 = vmatprep.subr.bf16.mxu0 0
        %399 = vmatpush1.bf16.msra.mxu0 0
        %400 = vmatprep.subr.bf16.mxu0 0
        %401 = vmatpush1.bf16.msra.mxu0 0
        %402 = vmatprep.subr.bf16.mxu0 0
        %403 = vmatpush1.bf16.msra.mxu0 0
        %404 = vmatprep.subr.bf16.mxu0 0
        %405 = vmatpush1.bf16.msra.mxu0 0
        %406 = vmatprep.subr.bf16.mxu0 0
        %407 = vmatpush1.bf16.msra.mxu0 0
        %408 = vmatprep.subr.bf16.mxu0 0
        %409 = vmatpush1.bf16.msra.mxu0 0
        %410 = vmatprep.subr.bf16.mxu0 0
        %411 = vmatpush1.bf16.msra.mxu0 0
        %412 = vmatprep.subr.bf16.mxu0 0
        %413 = vmatpush1.bf16.msra.mxu0 0
        %414 = vmatprep.subr.bf16.mxu0 0
        %415 = vmatpush1.bf16.msra.mxu0 0
        %416 = vmatprep.mubr.bf16.mxu0 0
        %417 = vmatmul.mubr.bf16.gmra.mrb[0].mxu0 %v382
        %v418 = vpop.f32.mrb[0].mxu0
        %v419 = vadd.f32 %v366, %v418
        %v420 = vpop.f32.mrb[0].mxu0
        %v421 = vpop.f32.mrb[0].mxu0
        %v422 = vadd.f32 %v366, %v421
        %v423 = vpop.f32.mrb[0].mxu0
        %424 = vdwg.mxu0
        %v425 = vmax.f32 %v419, 0.0
        %v426 = vmax.f32 %v422, 0.0
        %v427 = vpack.c.bf16 %v426, %v425
        %v428 = vld [vmem:[#allocation6] sm:$0xf]
        %v429 = vld [vmem:[#allocation6 + $0x4] sm:$0xf]
        %v430 = vld [vmem:[#allocation6 + $0x8] sm:$0xf]
        %v431 = vld [vmem:[#allocation6 + $0xc] sm:$0xf]
        %v432 = vld [vmem:[#allocation6 + $0x10] sm:$0xf]
        %v433 = vld [vmem:[#allocation6 + $0x14] sm:$0xf]
        %v434 = vld [vmem:[#allocation6 + $0x18] sm:$0xf]
        %v435 = vld [vmem:[#allocation6 + $0x1c] sm:$0xf]
        %v436 = vld [vmem:[#allocation6 + $0x20] sm:$0xf]
        %v437 = vld [vmem:[#allocation6 + $0x24] sm:$0xf]
        %v438 = vld [vmem:[#allocation6 + $0x28] sm:$0xf]
        %v439 = vld [vmem:[#allocation6 + $0x2c] sm:$0xf]
        %v440 = vld [vmem:[#allocation6 + $0x30] sm:$0xf]
        %v441 = vld [vmem:[#allocation6 + $0x34] sm:$0xf]
        %v442 = vld [vmem:[#allocation6 + $0x38] sm:$0xf]
        %v443 = vld [vmem:[#allocation6 + $0x3c] sm:$0xf]
        %v444 = vld [vmem:[%s4] sm:$0x1]
        %v446 = vlaneseq
        %v447 = vshrl.u32 %v446, 7
        %v448 = vsub.s32 0, %v447
        %v449 = vrot.slane %v444, %v448
        %v467 = vunpack.c.l.b16 %v428
        %v468 = vunpack.c.l.b16 %v429
        %v469 = vunpack.c.l.b16 %v430
        %v470 = vunpack.c.l.b16 %v431
        %v471 = vunpack.c.l.b16 %v432
        %v472 = vunpack.c.l.b16 %v433
        %v473 = vunpack.c.l.b16 %v434
        %v474 = vunpack.c.l.b16 %v435
        %v475 = vunpack.c.l.b16 %v436
        %v476 = vunpack.c.l.b16 %v437
        %v477 = vunpack.c.l.b16 %v438
        %v478 = vunpack.c.l.b16 %v439
        %v479 = vunpack.c.l.b16 %v440
        %v480 = vunpack.c.l.b16 %v441
        %v481 = vunpack.c.l.b16 %v442
        %v482 = vunpack.c.l.b16 %v443
        %v483 = vpack.c.b16 %v468, %v467
        %v484 = vpack.c.b16 %v470, %v469
        %v485 = vpack.c.b16 %v472, %v471
        %v486 = vpack.c.b16 %v474, %v473
        %v487 = vpack.c.b16 %v476, %v475
        %v488 = vpack.c.b16 %v478, %v477
        %v489 = vpack.c.b16 %v480, %v479
        %v490 = vpack.c.b16 %v482, %v481
        %499 = vmatprep.subr.bf16.mxu0 0
        %500 = vmatpush1.bf16.msra.mxu0 %v483
        %501 = vmatprep.subr.bf16.mxu0 0
        %502 = vmatpush1.bf16.msra.mxu0 %v484
        %503 = vmatprep.subr.bf16.mxu0 0
        %504 = vmatpush1.bf16.msra.mxu0 %v485
        %505 = vmatprep.subr.bf16.mxu0 0
        %506 = vmatpush1.bf16.msra.mxu0 %v486
        %507 = vmatprep.subr.bf16.mxu0 0
        %508 = vmatpush1.bf16.msra.mxu0 %v487
        %509 = vmatprep.subr.bf16.mxu0 0
        %510 = vmatpush1.bf16.msra.mxu0 %v488
        %511 = vmatprep.subr.bf16.mxu0 0
        %512 = vmatpush1.bf16.msra.mxu0 %v489
        %513 = vmatprep.subr.bf16.mxu0 0
        %514 = vmatpush1.bf16.msra.mxu0 %v490
        %515 = vmatprep.subr.bf16.mxu0 0
        %516 = vmatpush1.bf16.msra.mxu0 0
        %517 = vmatprep.subr.bf16.mxu0 0
        %518 = vmatpush1.bf16.msra.mxu0 0
        %519 = vmatprep.subr.bf16.mxu0 0
        %520 = vmatpush1.bf16.msra.mxu0 0
        %521 = vmatprep.subr.bf16.mxu0 0
        %522 = vmatpush1.bf16.msra.mxu0 0
        %523 = vmatprep.subr.bf16.mxu0 0
        %524 = vmatpush1.bf16.msra.mxu0 0
        %525 = vmatprep.subr.bf16.mxu0 0
        %526 = vmatpush1.bf16.msra.mxu0 0
        %527 = vmatprep.subr.bf16.mxu0 0
        %528 = vmatpush1.bf16.msra.mxu0 0
        %529 = vmatprep.subr.bf16.mxu0 0
        %530 = vmatpush1.bf16.msra.mxu0 0
        %531 = vmatprep.mubr.bf16.mxu0 0
        %532 = vmatmul.mubr.bf16.gmra.mrb[0].mxu0 %v427
        %v533 = vpop.f32.mrb[0].mxu0
        %v534 = vadd.f32 %v449, %v533
        %v535 = vpop.f32.mrb[0].mxu0
        %v536 = vpop.f32.mrb[0].mxu0
        %v537 = vadd.f32 %v449, %v536
        %v538 = vpop.f32.mrb[0].mxu0
        %539 = vdwg.mxu0
        %v540 = vmax.f32 %v534, 0.0
        %v541 = vmax.f32 %v537, 0.0
        %v542 = vpack.c.bf16 %v541, %v540
        %v543 = vld [vmem:[#allocation7] sm:$0xf]
        %v544 = vld [vmem:[#allocation7 + $0x4] sm:$0xf]
        %v545 = vld [vmem:[#allocation7 + $0x8] sm:$0xf]
        %v546 = vld [vmem:[#allocation7 + $0xc] sm:$0xf]
        %v547 = vld [vmem:[#allocation7 + $0x10] sm:$0xf]
        %v548 = vld [vmem:[#allocation7 + $0x14] sm:$0xf]
        %v549 = vld [vmem:[#allocation7 + $0x18] sm:$0xf]
        %v550 = vld [vmem:[#allocation7 + $0x1c] sm:$0xf]
        %v551 = vld [vmem:[#allocation7 + $0x20] sm:$0xf]
        %v552 = vld [vmem:[#allocation7 + $0x24] sm:$0xf]
        %v553 = vld [vmem:[#allocation7 + $0x28] sm:$0xf]
        %v554 = vld [vmem:[#allocation7 + $0x2c] sm:$0xf]
        %v555 = vld [vmem:[#allocation7 + $0x30] sm:$0xf]
        %v556 = vld [vmem:[#allocation7 + $0x34] sm:$0xf]
        %v557 = vld [vmem:[#allocation7 + $0x38] sm:$0xf]
        %v558 = vld [vmem:[#allocation7 + $0x3c] sm:$0xf]
        %v559 = vld [vmem:[%s6] sm:$0x1]
        %v561 = vlaneseq
        %v562 = vshrl.u32 %v561, 7
        %v563 = vsub.s32 0, %v562
        %v564 = vrot.slane %v559, %v563
        %v582 = vunpack.c.l.b16 %v543
        %v583 = vunpack.c.l.b16 %v544
        %v584 = vunpack.c.l.b16 %v545
        %v585 = vunpack.c.l.b16 %v546
        %v586 = vunpack.c.l.b16 %v547
        %v587 = vunpack.c.l.b16 %v548
        %v588 = vunpack.c.l.b16 %v549
        %v589 = vunpack.c.l.b16 %v550
        %v590 = vunpack.c.l.b16 %v551
        %v591 = vunpack.c.l.b16 %v552
        %v592 = vunpack.c.l.b16 %v553
        %v593 = vunpack.c.l.b16 %v554
        %v594 = vunpack.c.l.b16 %v555
        %v595 = vunpack.c.l.b16 %v556
        %v596 = vunpack.c.l.b16 %v557
        %v597 = vunpack.c.l.b16 %v558
        %v598 = vpack.c.b16 %v583, %v582
        %v599 = vpack.c.b16 %v585, %v584
        %v600 = vpack.c.b16 %v587, %v586
        %v601 = vpack.c.b16 %v589, %v588
        %v602 = vpack.c.b16 %v591, %v590
        %v603 = vpack.c.b16 %v593, %v592
        %v604 = vpack.c.b16 %v595, %v594
        %v605 = vpack.c.b16 %v597, %v596
        %614 = vmatprep.subr.bf16.mxu0 0
        %615 = vmatpush1.bf16.msra.mxu0 %v598
        %616 = vmatprep.subr.bf16.mxu0 0
        %617 = vmatpush1.bf16.msra.mxu0 %v599
        %618 = vmatprep.subr.bf16.mxu0 0
        %619 = vmatpush1.bf16.msra.mxu0 %v600
        %620 = vmatprep.subr.bf16.mxu0 0
        %621 = vmatpush1.bf16.msra.mxu0 %v601
        %622 = vmatprep.subr.bf16.mxu0 0
        %623 = vmatpush1.bf16.msra.mxu0 %v602
        %624 = vmatprep.subr.bf16.mxu0 0
        %625 = vmatpush1.bf16.msra.mxu0 %v603
        %626 = vmatprep.subr.bf16.mxu0 0
        %627 = vmatpush1.bf16.msra.mxu0 %v604
        %628 = vmatprep.subr.bf16.mxu0 0
        %629 = vmatpush1.bf16.msra.mxu0 %v605
        %630 = vmatprep.subr.bf16.mxu0 0
        %631 = vmatpush1.bf16.msra.mxu0 0
        %632 = vmatprep.subr.bf16.mxu0 0
        %633 = vmatpush1.bf16.msra.mxu0 0
        %634 = vmatprep.subr.bf16.mxu0 0
        %635 = vmatpush1.bf16.msra.mxu0 0
        %636 = vmatprep.subr.bf16.mxu0 0
        %637 = vmatpush1.bf16.msra.mxu0 0
        %638 = vmatprep.subr.bf16.mxu0 0
        %639 = vmatpush1.bf16.msra.mxu0 0
        %640 = vmatprep.subr.bf16.mxu0 0
        %641 = vmatpush1.bf16.msra.mxu0 0
        %642 = vmatprep.subr.bf16.mxu0 0
        %643 = vmatpush1.bf16.msra.mxu0 0
        %644 = vmatprep.subr.bf16.mxu0 0
        %645 = vmatpush1.bf16.msra.mxu0 0
        %646 = vmatprep.mubr.bf16.mxu0 0
        %647 = vmatmul.mubr.bf16.gmra.mrb[0].mxu0 %v542
        %v648 = vpop.f32.mrb[0].mxu0
        %v649 = vadd.f32 %v564, %v648
        %v650 = vpop.f32.mrb[0].mxu0
        %v651 = vpop.f32.mrb[0].mxu0
        %v652 = vadd.f32 %v564, %v651
        %v653 = vpop.f32.mrb[0].mxu0
        %654 = vdwg.mxu0
        %v655 = vmax.f32 %v649, 0.0
        %v656 = vmax.f32 %v652, 0.0
        %657 = vst [vmem:[%s342] sm:$0xff] %v655
        %658 = vst [vmem:[%s342 + $0x8] sm:$0xff] %v656
        %s659 = sand.u32 %s183, 1
        %s660 = sand.u32 %s183, 1
        %s661 = smul.addr %s660, 16
        %s662 = scalar_lea.vmem [#allocation9], %s661
        // Predicated region
        $region65: #{dnn_forward.1} parent=47 // pred_check
          %p663 = pneg %p193
        $region66: #{dnn_forward.1} parent=47 // pred_check_branch
          %665 = sbr.rel (%p663) target = $region68
        $region67: #{dnn_forward.1} parent=47 // pred_region
          %s666 = smul.u32 2, %s23
          %s667 = ssub.s32 3, %s666
          %p668 = scmp.lt.s32.totalorder %s667, 2
          %s669 = scalar_select %p668, %s667, 2
          %s670 = smul.u32 128, %s669
          %p671 = scmp.ne.s32.totalorder 0, %s670
          %s672 = smul.addr %s666, 8
          %s673 = scalar_lea.vmem %s7, %s672
          // Predicated region
          $region69: #{dnn_forward.1} parent=67 // pred_check
            %p674 = pneg %p671
          $region70: #{dnn_forward.1} parent=67 // pred_check_branch
            %676 = sbr.rel (%p674) target = $region72
          $region71: #{dnn_forward.1} parent=67 // pred_region
            // Predicated region
            $region73: #{dnn_forward.1} parent=71 // pred_check
              _
            $region74: #{dnn_forward.1} parent=71 // pred_check_branch
              %678 = sbr.rel (0) target = $region76
            $region75: #{dnn_forward.1} parent=71 // pred_region
              // Predicated region
              $region95: #{dnn_forward.1} parent=75 // pred_check
                _
              $region96: #{dnn_forward.1} parent=75 // pred_check_branch
                %729 = sbr.rel (0) target = $region98
              $region97: #{dnn_forward.1} parent=75 // pred_region
                %s730 = sshrl.u32 %s669, 1
                // While loop
                $region99: #{dnn_forward.1} parent=97 // loop_pre_header
                  _
                $region100: #{dnn_forward.1} parent=97 // loop_header
                  %s732 = sphi 0, %s734
                  %p733 = scmp.ge.s32.totalorder %s732, %s730
                  %s737 = sphi 0, %s746
                  %s738 = sphi %s662, %s749
                  %s739 = sphi %s673, %s750
                $region101: #{dnn_forward.1} parent=97 // loop_header_branch
                  %736 = sbr.rel (%p733) target = $region105
                $region102: #{dnn_forward.1} parent=97 // loop_body
                  %v740 = vld [vmem:[%s738] sm:$0xff]
                  %741 = vst [vmem:[%s739] sm:$0xff] %v740
                  %v742 = vld [vmem:[%s738 + $0x8] sm:$0xff]
                  %743 = vst [vmem:[%s739 + $0x8] sm:$0xff] %v742
                  %s744 = sadd.s32 1, %s737
                  %p745 = scmp.ge.s32.totalorder %s744, %s730
                  %s746 = scalar_select %p745, 0, %s744
                  %s747 = smul.u32 %s746, 16
                  %s748 = smul.u32 %s746, 16
                  %s749 = scalar_lea.vmem %s662, %s747 [#allocation9]
                  %s750 = scalar_lea.vmem %s673, %s748
                $region103: #{dnn_forward.1} parent=97 // loop_footer
                  %s734 = sadd.s32 %s732, 1
                $region104: #{dnn_forward.1} parent=97 // loop_footer_branch
                  %731 = sbr.rel target = $region100
                $region105: #{dnn_forward.1} parent=97 // loop_exit
                  _
                %s751 = sshrl.u32 %s669, 1
                %s752 = sand.u32 %s669, 1
                %s753 = smul.u32 %s751, 2
                %s754 = smul.u32 8, %s753
                %s755 = scalar_lea.vmem %s662, %s754 [#allocation9]
                %s756 = smul.u32 8, %s753
                %s757 = scalar_lea.vmem %s673, %s756
                // While loop
                $region106: #{dnn_forward.1} parent=97 // loop_pre_header
                  _
                $region107: #{dnn_forward.1} parent=97 // loop_header
                  %s759 = sphi 0, %s761
                  %p760 = scmp.ge.s32.totalorder %s759, %s752
                  %s764 = sphi 0, %s771
                  %s765 = sphi %s755, %s774
                  %s766 = sphi %s757, %s775
                $region108: #{dnn_forward.1} parent=97 // loop_header_branch
                  %763 = sbr.rel (%p760) target = $region112
                $region109: #{dnn_forward.1} parent=97 // loop_body
                  %v767 = vld [vmem:[%s765] sm:$0xff]
                  %768 = vst [vmem:[%s766] sm:$0xff] %v767
                  %s769 = sadd.s32 1, %s764
                  %p770 = scmp.ge.s32.totalorder %s769, %s752
                  %s771 = scalar_select %p770, 0, %s769
                  %s772 = smul.u32 %s771, 8
                  %s773 = smul.u32 %s771, 8
                  %s774 = scalar_lea.vmem %s755, %s772 [#allocation9]
                  %s775 = scalar_lea.vmem %s757, %s773
                $region110: #{dnn_forward.1} parent=97 // loop_footer
                  %s761 = sadd.s32 %s759, 1
                $region111: #{dnn_forward.1} parent=97 // loop_footer_branch
                  %758 = sbr.rel target = $region107
                $region112: #{dnn_forward.1} parent=97 // loop_exit
                  _
              $region98: #{dnn_forward.1} parent=75 // pred_fallthru
                _
              // Predicated region
              $region113: #{dnn_forward.1} parent=75 // pred_check
                _
              $region114: #{dnn_forward.1} parent=75 // pred_check_branch
                %777 = sbr.rel target = $region116
              $region115: #{dnn_forward.1} parent=75 // pred_region
                _
              $region116: #{dnn_forward.1} parent=75 // pred_fallthru
                _
            $region76: #{dnn_forward.1} parent=71 // pred_fallthru
              _
            // Predicated region
            $region77: #{dnn_forward.1} parent=71 // pred_check
              _
            $region78: #{dnn_forward.1} parent=71 // pred_check_branch
              %680 = sbr.rel target = $region80
            $region79: #{dnn_forward.1} parent=71 // pred_region
              %s682 = sshrl.u32 %s669, 1
              // While loop
              $region81: #{dnn_forward.1} parent=79 // loop_pre_header
                _
              $region82: #{dnn_forward.1} parent=79 // loop_header
                %s684 = sphi 0, %s686
                %p685 = scmp.ge.s32.totalorder %s684, %s682
                %s689 = sphi 0, %s698
                %s690 = sphi %s662, %s701
                %s691 = sphi %s673, %s702
              $region83: #{dnn_forward.1} parent=79 // loop_header_branch
                %688 = sbr.rel (%p685) target = $region87
              $region84: #{dnn_forward.1} parent=79 // loop_body
                %v692 = vld [vmem:[%s690] sm:$0xff]
                %693 = vst [vmem:[%s691] sm:$0xff] %v692
                %v694 = vld [vmem:[%s690 + $0x8] sm:$0xff]
                %695 = vst [vmem:[%s691 + $0x8] sm:$0xff] %v694
                %s696 = sadd.s32 1, %s689
                %p697 = scmp.ge.s32.totalorder %s696, %s682
                %s698 = scalar_select %p697, 0, %s696
                %s699 = smul.u32 %s698, 16
                %s700 = smul.u32 %s698, 16
                %s701 = scalar_lea.vmem %s662, %s699 [#allocation9]
                %s702 = scalar_lea.vmem %s673, %s700
              $region85: #{dnn_forward.1} parent=79 // loop_footer
                %s686 = sadd.s32 %s684, 1
              $region86: #{dnn_forward.1} parent=79 // loop_footer_branch
                %683 = sbr.rel target = $region82
              $region87: #{dnn_forward.1} parent=79 // loop_exit
                _
              %s703 = sshrl.u32 %s669, 1
              %s704 = sand.u32 %s669, 1
              %s705 = smul.u32 %s703, 2
              %s706 = smul.u32 8, %s705
              %s707 = scalar_lea.vmem %s662, %s706 [#allocation9]
              %s708 = smul.u32 8, %s705
              %s709 = scalar_lea.vmem %s673, %s708
              // While loop
              $region88: #{dnn_forward.1} parent=79 // loop_pre_header
                _
              $region89: #{dnn_forward.1} parent=79 // loop_header
                %s711 = sphi 0, %s713
                %p712 = scmp.ge.s32.totalorder %s711, %s704
                %s716 = sphi 0, %s723
                %s717 = sphi %s707, %s726
                %s718 = sphi %s709, %s727
              $region90: #{dnn_forward.1} parent=79 // loop_header_branch
                %715 = sbr.rel (%p712) target = $region94
              $region91: #{dnn_forward.1} parent=79 // loop_body
                %v719 = vld [vmem:[%s717] sm:$0xff]
                %720 = vst [vmem:[%s718] sm:$0xff] %v719
                %s721 = sadd.s32 1, %s716
                %p722 = scmp.ge.s32.totalorder %s721, %s704
                %s723 = scalar_select %p722, 0, %s721
                %s724 = smul.u32 %s723, 8
                %s725 = smul.u32 %s723, 8
                %s726 = scalar_lea.vmem %s707, %s724 [#allocation9]
                %s727 = scalar_lea.vmem %s709, %s725
              $region92: #{dnn_forward.1} parent=79 // loop_footer
                %s713 = sadd.s32 %s711, 1
              $region93: #{dnn_forward.1} parent=79 // loop_footer_branch
                %710 = sbr.rel target = $region89
              $region94: #{dnn_forward.1} parent=79 // loop_exit
                _
            $region80: #{dnn_forward.1} parent=71 // pred_fallthru
              _
          $region72: #{dnn_forward.1} parent=67 // pred_fallthru
            _
          %778 = vnop
        $region68: #{dnn_forward.1} parent=47 // pred_fallthru
          _
      $region48: #{dnn_forward.1} parent=5 // pred_fallthru
        _
      %p779 = scmp.le.s32.totalorder 2, %s18
      // Predicated region
      $region117: #{dnn_forward.1} parent=5 // pred_check
        %p780 = pneg %p779
      $region118: #{dnn_forward.1} parent=5 // pred_check_branch
        %782 = sbr.rel (%p780) target = $region120
      $region119: #{dnn_forward.1} parent=5 // pred_region
        %s783 = ssub.s32 %s18, 2
        // Predicated region
        $region121: #{dnn_forward.1} parent=119 // pred_check
          %p784 = pneg %p199
        $region122: #{dnn_forward.1} parent=119 // pred_check_branch
          %786 = sbr.rel (%p784) target = $region124
        $region123: #{dnn_forward.1} parent=119 // pred_region
          %s787 = sand.u32 %s184, 1
          %s788 = sand.u32 %s184, 1
          %s789 = smul.addr %s788, 16
          %s790 = scalar_lea.vmem [#allocation9], %s789
        $region124: #{dnn_forward.1} parent=119 // pred_fallthru
          _
      $region120: #{dnn_forward.1} parent=5 // pred_fallthru
        _
    $region6: #{dnn_forward.1} parent=1 // loop_footer
      %s22 = sadd.s32 1, %s18
    $region7: #{dnn_forward.1} parent=1 // loop_footer_branch
      %17 = sbr.rel target = $region3
    $region8: #{dnn_forward.1} parent=1 // loop_exit
      _
    %791 = vsyncpa [#allocation3], 1
    %s792 = scalar_lea.sflag [#allocation3], 1
    %793 = vsyncpa %s792, 1
    %794 = vsyncpa [#allocation5], 1
    %795 = vsyncpa [#allocation8], 1

</llo_original>
